<compile_context>
chip_gen: v6e
topology: v6e:2x2x1
jax: 0.10.0
libtpu: 0.0.40
codegen_flags: <defaults>
</compile_context>

<pallas_src>
import functools

import jax
import jax.numpy as jnp
from jax.experimental import pallas as pl
from jax.experimental.pallas import tpu as pltpu


def _attention_kernel(x_ref, gln_ref, wqkv_ref, wo_ref, qg_ref, kg_ref, o_ref,
                      *, heads, dim_head, ln_eps=1e-5, norm_eps=1e-12,
                      approx_softmax_recip=False):
    n = x_ref.shape[1]
    dim = x_ref.shape[2]

    x = x_ref[0].astype(jnp.float32)                               # (n, dim)

    # ---- LayerNorm (beta = 0), f32 (keep all VPU/EUP math in f32 for v5e) --
    mean = jnp.mean(x, axis=-1, keepdims=True)
    var = jnp.mean((x - mean) ** 2, axis=-1, keepdims=True)
    xn = (x - mean) * jax.lax.rsqrt(var + ln_eps) * gln_ref[...]   # (n, dim)

    # ---- fused QKV projection: one deep-K (K = dim) 2-D MXU matmul --------
    # Only one (n, dim) copy of the normalized activations exists (no
    # heads-wide broadcast).
    xb = xn.astype(jnp.bfloat16)
    qkv = jnp.dot(xb, wqkv_ref[...],
                  preferred_element_type=jnp.float32)              # (n, 3*inner)

    # Head-major (3*heads, n, dim_head): static lane slices of width dim_head
    # plus a leading-axis stack; q/k/v are then free leading-axis slices.
    qkv_h = jnp.stack(
        [qkv[:, c * dim_head:(c + 1) * dim_head] for c in range(3 * heads)],
        axis=0)                                                    # (3h, n, dh)
    q = qkv_h[:heads]
    k = qkv_h[heads:2 * heads]
    v = qkv_h[2 * heads:]

    # ---- QK RMSNorm in f32.  Gammas arrive pre-multiplied by sqrt(dim_head).
    # F.normalize clamps the norm at eps: x * rsqrt(max(ss, eps^2)).
    def _rms(t, g):
        ss = jnp.sum(t * t, axis=-1, keepdims=True)
        return t * jax.lax.rsqrt(jnp.maximum(ss, norm_eps * norm_eps)) * g

    qn = _rms(q, qg_ref[...])                                      # (h, n, dh)
    kn = _rms(k, kg_ref[...])

    # ---- heads-batched attention (bf16 MXU operands, f32 accumulate) ------
    # TODO(synk): tile q/kv flash-style (online softmax) for long sequences so
    #             this (heads, n, n) block never materializes (v7x 64MiB VMEM).
    dots = jnp.einsum('hqd,hkd->hqk', qn.astype(jnp.bfloat16),
                      kn.astype(jnp.bfloat16),
                      preferred_element_type=jnp.float32)          # (h, n, n)
    dots = dots - jnp.max(dots, axis=-1, keepdims=True)
    e = jnp.exp(dots)                                              # f32 (EUP)
    attn = e * pl.reciprocal(jnp.sum(e, axis=-1, keepdims=True),
                             approx=approx_softmax_recip)

    out = jnp.einsum('hqk,hkd->hqd', attn.astype(jnp.bfloat16),
                     v.astype(jnp.bfloat16),
                     preferred_element_type=jnp.float32)           # (h, n, dh)

    # ---- output projection: pack heads (lane concat) then ONE deep-K matmul
    # (K = inner) instead of per-head K=dim_head matmuls + a head sum.
    out_p = jnp.concatenate([out[h] for h in range(heads)], axis=-1)  # (n, inner)
    o = jnp.dot(out_p.astype(jnp.bfloat16), wo_ref[...],
                preferred_element_type=jnp.float32)                # (n, dim)

    # ---- lane-dense store: o_ref block is (1, 1, n*dim).  Build the flat
    # row-major slab via per-row lane concat (dim = 32 < 128 would otherwise
    # force masked partial stores).  For production dim >= 128, store a
    # (1, n, dim) block instead and drop this concat.
    flat = jnp.concatenate([o[i:i + 1, :] for i in range(n)], axis=-1)  # (1, n*dim)
    o_ref[0] = flat.astype(o_ref.dtype)


def _build_attention_call(*, b, n, dim, heads, dim_head, out_dtype,
                          approx_softmax_recip, single_buffer_weights):
    inner = heads * dim_head

    def const_spec(shape):
        index_map = lambda i: (0,) * len(shape)
        if single_buffer_weights:
            # Grid-invariant operands: double buffering buys no overlap.
            return pl.BlockSpec(shape, index_map,
                                pipeline_mode=pl.Buffered(1))
        return pl.BlockSpec(shape, index_map)

    kernel = functools.partial(_attention_kernel, heads=heads,
                               dim_head=dim_head,
                               approx_softmax_recip=approx_softmax_recip)

    flops = 2 * b * (n * dim * 3 * inner               # QKV projection
                     + 2 * heads * n * n * dim_head    # QK^T and P@V
                     + n * inner * dim)                # output projection
    transcendentals = b * heads * n * n                # softmax exp
    bytes_accessed = (2 * b * n * dim * 4                        # x + out
                      + (dim * 3 * inner + inner * dim) * 2      # bf16 weights
                      + (dim + 2 * heads * dim_head) * 4)        # gammas

    return pl.pallas_call(
        kernel,
        out_shape=jax.ShapeDtypeStruct((b, 1, n * dim), out_dtype),
        grid_spec=pltpu.PrefetchScalarGridSpec(
            num_scalar_prefetch=0,
            grid=(b,),
            in_specs=[
                pl.BlockSpec((1, n, dim), lambda i: (i, 0, 0)),    # x
                const_spec((1, dim)),                              # LN gamma
                const_spec((dim, 3 * inner)),                      # [Wq|Wk|Wv]
                const_spec((inner, dim)),                          # Wo
                const_spec((heads, 1, dim_head)),                  # q gamma*sqrt(dh)
                const_spec((heads, 1, dim_head)),                  # k gamma*sqrt(dh)
            ],
            out_specs=pl.BlockSpec((1, 1, n * dim), lambda i: (i, 0, 0)),
        ),
        compiler_params=pltpu.CompilerParams(
            dimension_semantics=("parallel",)),
        cost_estimate=pl.CostEstimate(flops=flops,
                                      transcendentals=transcendentals,
                                      bytes_accessed=bytes_accessed),
    )


def attention_forward(x, params, *, heads, dim_head,
                      approx_softmax_recip=False):
    """x: (b, n, dim) float32 -> (b, n, dim).

    Mirrors Attention.forward with context=None, mask=None, attn_mask=None,
    dropout p=0.
    """
    b, n, dim = x.shape
    scale = dim_head ** 0.5

    # Wrapper-side (hoisted) weight prep: one fused bf16 QKV weight, 2-D Wo,
    # RMSNorm gammas with sqrt(dim_head) folded in.
    gln = params["ln_gamma"].reshape(1, dim).astype(jnp.float32)
    wqkv = jnp.concatenate([params["wq"], params["wkv"]],
                           axis=1).astype(jnp.bfloat16)            # (dim, 3*inner)
    wo = params["wo"].astype(jnp.bfloat16)                         # (inner, dim)
    qg = (params["q_gamma"].reshape(heads, 1, dim_head) * scale).astype(jnp.float32)
    kg = (params["k_gamma"].reshape(heads, 1, dim_head) * scale).astype(jnp.float32)

    args = (x, gln, wqkv, wo, qg, kg)

    def run(single_buffer_weights):
        call = _build_attention_call(
            b=b, n=n, dim=dim, heads=heads, dim_head=dim_head,
            out_dtype=x.dtype, approx_softmax_recip=approx_softmax_recip,
            single_buffer_weights=single_buffer_weights)
        return call(*args)

    try:
        out_flat = run(True)
    except Exception:
        # Graceful degradation if this jax build lacks BlockSpec pipeline_mode
        # / pl.Buffered: identical semantics, weights just stay double-buffered.
        out_flat = run(False)

    return out_flat.reshape(b, n, dim)


def attention_reference(x, params, *, heads, dim_head,
                        matmul_dtype=jnp.float32):
    """Pure-JAX reference mirroring the PyTorch forward.

    matmul_dtype=bfloat16 reproduces the kernel's MXU numerics (bf16 operands,
    f32 accumulate); float32 is the exact module spec.
    """
    b, n, dim = x.shape
    inner = heads * dim_head
    f32 = jnp.float32
    cast = lambda t: t.astype(matmul_dtype)

    x = x.astype(f32)
    mean = jnp.mean(x, axis=-1, keepdims=True)
    var = jnp.mean((x - mean) ** 2, axis=-1, keepdims=True)
    xn = (x - mean) * jax.lax.rsqrt(var + 1e-5) * params["ln_gamma"]

    q = jnp.matmul(cast(xn), cast(params["wq"]), preferred_element_type=f32)
    kv = jnp.matmul(cast(xn), cast(params["wkv"]), preferred_element_type=f32)
    k, v = kv[..., :inner], kv[..., inner:]

    def split_heads(t):
        return t.reshape(b, n, heads, dim_head).transpose(0, 2, 1, 3)

    q, k, v = map(split_heads, (q, k, v))
    scale = dim_head ** 0.5

    def rmsnorm(t, gamma):
        ss = jnp.sum(t * t, axis=-1, keepdims=True)
        return t * jax.lax.rsqrt(jnp.maximum(ss, 1e-24)) * scale * gamma

    q = rmsnorm(q, params["q_gamma"])
    k = rmsnorm(k, params["k_gamma"])
    dots = jnp.einsum("bhid,bhjd->bhij", cast(q), cast(k),
                      preferred_element_type=f32)
    attn = jax.nn.softmax(dots, axis=-1)
    out = jnp.einsum("bhij,bhjd->bhid", cast(attn), cast(v),
                     preferred_element_type=f32)
    out = out.transpose(0, 2, 1, 3).reshape(b, n, inner)
    return jnp.matmul(cast(out), cast(params["wo"]), preferred_element_type=f32)


if __name__ == "__main__":
    # Small shapes consistent with the module: dim=32, heads=4, dim_head=16.
    batch, seq, dim = 2, 8, 32
    heads, dim_head = 4, 16
    inner = heads * dim_head

    key = jax.random.PRNGKey(0)
    kx, kq, kkv, ko, kg1, kg2, kg3 = jax.random.split(key, 7)

    x = jax.random.normal(kx, (batch, seq, dim), dtype=jnp.float32)

    params = {
        "ln_gamma": 1.0 + 0.1 * jax.random.normal(kg1, (dim,), jnp.float32),
        "q_gamma": 1.0 + 0.1 * jax.random.normal(kg2, (heads, 1, dim_head), jnp.float32),
        "k_gamma": 1.0 + 0.1 * jax.random.normal(kg3, (heads, 1, dim_head), jnp.float32),
        "wq": 0.02 * jax.random.normal(kq, (dim, inner), jnp.float32),
        "wkv": 0.02 * jax.random.normal(kkv, (dim, 2 * inner), jnp.float32),
        "wo": 0.02 * jax.random.normal(ko, (inner, dim), jnp.float32),
    }

    out = attention_forward(x, params, heads=heads, dim_head=dim_head)
    out = jax.block_until_ready(out)
    assert out.shape == (batch, seq, dim)

    # Check against a reference that uses the same matmul numerics the kernel
    # does (bf16 MXU operands, f32 accumulation).
    ref_matched = attention_reference(x, params, heads=heads, dim_head=dim_head,
                                      matmul_dtype=jnp.bfloat16)
    err_matched = float(jnp.max(jnp.abs(out - ref_matched)))
    assert jnp.allclose(out, ref_matched, atol=1e-3, rtol=1e-2), err_matched

    # Sanity check against the exact f32 module spec (tolerance accounts for
    # the intentional bf16 matmul operands).
    ref_f32 = attention_reference(x, params, heads=heads, dim_head=dim_head,
                                  matmul_dtype=jnp.float32)
    err_f32 = float(jnp.max(jnp.abs(out - ref_f32)))
    assert jnp.allclose(out, ref_f32, atol=5e-3, rtol=5e-2), err_f32

    print("KERNEL_OK")
</pallas_src>

<mosaic_0001>
module attributes {stable_mosaic.version = 11 : i64} {
  func.func @_attention_kernel(%arg0: i32, %arg1: memref<1x8x32xf32, #tpu.memory_space<vmem>>, %arg2: memref<1x32xf32, #tpu.memory_space<vmem>>, %arg3: memref<32x192xbf16, #tpu.memory_space<vmem>>, %arg4: memref<64x32xbf16, #tpu.memory_space<vmem>>, %arg5: memref<4x1x16xf32, #tpu.memory_space<vmem>>, %arg6: memref<4x1x16xf32, #tpu.memory_space<vmem>>, %arg7: memref<1x1x256xf32, #tpu.memory_space<vmem>>) attributes {dimension_semantics = [#tpu.dimension_semantics<parallel>], iteration_bounds = array<i64: 2>, scalar_prefetch = 0 : i64, scratch_operands = 0 : i64, tpu.core_type = #tpu.core_type<tc>, window_params = [{transform_indices = @transform_0, window_bounds = array<i64: 1, 8, 32>}, {pipeline_mode = #tpu.pipeline_mode<synchronous>, transform_indices = @transform_1, window_bounds = array<i64: 1, 32>}, {pipeline_mode = #tpu.pipeline_mode<synchronous>, transform_indices = @transform_2, window_bounds = array<i64: 32, 192>}, {pipeline_mode = #tpu.pipeline_mode<synchronous>, transform_indices = @transform_3, window_bounds = array<i64: 64, 32>}, {pipeline_mode = #tpu.pipeline_mode<synchronous>, transform_indices = @transform_4, window_bounds = array<i64: 4, 1, 16>}, {pipeline_mode = #tpu.pipeline_mode<synchronous>, transform_indices = @transform_5, window_bounds = array<i64: 4, 1, 16>}, {transform_indices = @transform_6, window_bounds = array<i64: 1, 1, 256>}]} {
    %c0 = arith.constant 0 : index
    %c0_0 = arith.constant 0 : index
    %c0_1 = arith.constant 0 : index
    %0 = vector.load %arg1[%c0, %c0_0, %c0_1] : memref<1x8x32xf32, #tpu.memory_space<vmem>>, vector<1x8x32xf32>
    %1 = vector.shape_cast %0 : vector<1x8x32xf32> to vector<8x32xf32>
    %cst = arith.constant dense<0.000000e+00> : vector<8xf32>
    %2 = vector.multi_reduction <add>, %1, %cst [1] : vector<8x32xf32> to vector<8xf32>
    %3 = vector.shape_cast %2 : vector<8xf32> to vector<8x1xf32>
    %cst_2 = arith.constant 3.200000e+01 : f32
    %4 = vector.broadcast %cst_2 : f32 to vector<8x1xf32>
    %5 = arith.divf %3, %4 : vector<8x1xf32>
    %6 = vector.broadcast %5 : vector<8x1xf32> to vector<8x32xf32>
    %7 = arith.subf %1, %6 : vector<8x32xf32>
    %8 = arith.mulf %7, %7 : vector<8x32xf32>
    %cst_3 = arith.constant dense<0.000000e+00> : vector<8xf32>
    %9 = vector.multi_reduction <add>, %8, %cst_3 [1] : vector<8x32xf32> to vector<8xf32>
    %10 = vector.shape_cast %9 : vector<8xf32> to vector<8x1xf32>
    %cst_4 = arith.constant 3.200000e+01 : f32
    %11 = vector.broadcast %cst_4 : f32 to vector<8x1xf32>
    %12 = arith.divf %10, %11 : vector<8x1xf32>
    %13 = vector.broadcast %5 : vector<8x1xf32> to vector<8x32xf32>
    %14 = arith.subf %1, %13 : vector<8x32xf32>
    %cst_5 = arith.constant 9.99999974E-6 : f32
    %15 = vector.broadcast %cst_5 : f32 to vector<8x1xf32>
    %16 = arith.addf %12, %15 : vector<8x1xf32>
    %17 = math.rsqrt %16 : vector<8x1xf32>
    %18 = vector.broadcast %17 : vector<8x1xf32> to vector<8x32xf32>
    %19 = arith.mulf %14, %18 : vector<8x32xf32>
    %c0_6 = arith.constant 0 : index
    %c0_7 = arith.constant 0 : index
    %20 = vector.load %arg2[%c0_6, %c0_7] : memref<1x32xf32, #tpu.memory_space<vmem>>, vector<1x32xf32>
    %21 = vector.broadcast %20 : vector<1x32xf32> to vector<8x32xf32>
    %22 = arith.mulf %19, %21 : vector<8x32xf32>
    %23 = arith.truncf %22 : vector<8x32xf32> to vector<8x32xbf16>
    %c0_8 = arith.constant 0 : index
    %c0_9 = arith.constant 0 : index
    %24 = vector.load %arg3[%c0_8, %c0_9] : memref<32x192xbf16, #tpu.memory_space<vmem>>, vector<32x192xbf16>
    %cst_10 = arith.constant dense<0.000000e+00> : vector<8x192xf32>
    %25 = tpu.matmul %23, %24, %cst_10 {dimension_numbers = #tpu.dot_dimension_numbers<[1], [0], [0], [1], [0, 0, 1, 1], [], []>} : vector<8x32xbf16>, vector<32x192xbf16>, vector<8x192xf32> -> vector<8x192xf32>
    %26 = vector.extract_strided_slice %25 {offsets = [0, 0], sizes = [8, 16], strides = [1, 1]} : vector<8x192xf32> to vector<8x16xf32>
    %27 = vector.extract_strided_slice %25 {offsets = [0, 16], sizes = [8, 16], strides = [1, 1]} : vector<8x192xf32> to vector<8x16xf32>
    %28 = vector.extract_strided_slice %25 {offsets = [0, 32], sizes = [8, 16], strides = [1, 1]} : vector<8x192xf32> to vector<8x16xf32>
    %29 = vector.extract_strided_slice %25 {offsets = [0, 48], sizes = [8, 16], strides = [1, 1]} : vector<8x192xf32> to vector<8x16xf32>
    %30 = vector.extract_strided_slice %25 {offsets = [0, 64], sizes = [8, 16], strides = [1, 1]} : vector<8x192xf32> to vector<8x16xf32>
    %31 = vector.extract_strided_slice %25 {offsets = [0, 80], sizes = [8, 16], strides = [1, 1]} : vector<8x192xf32> to vector<8x16xf32>
    %32 = vector.extract_strided_slice %25 {offsets = [0, 96], sizes = [8, 16], strides = [1, 1]} : vector<8x192xf32> to vector<8x16xf32>
    %33 = vector.extract_strided_slice %25 {offsets = [0, 112], sizes = [8, 16], strides = [1, 1]} : vector<8x192xf32> to vector<8x16xf32>
    %34 = vector.extract_strided_slice %25 {offsets = [0, 128], sizes = [8, 16], strides = [1, 1]} : vector<8x192xf32> to vector<8x16xf32>
    %35 = vector.extract_strided_slice %25 {offsets = [0, 144], sizes = [8, 16], strides = [1, 1]} : vector<8x192xf32> to vector<8x16xf32>
    %36 = vector.extract_strided_slice %25 {offsets = [0, 160], sizes = [8, 16], strides = [1, 1]} : vector<8x192xf32> to vector<8x16xf32>
    %37 = vector.extract_strided_slice %25 {offsets = [0, 176], sizes = [8, 16], strides = [1, 1]} : vector<8x192xf32> to vector<8x16xf32>
    %38 = vector.shape_cast %26 : vector<8x16xf32> to vector<1x8x16xf32>
    %39 = vector.shape_cast %27 : vector<8x16xf32> to vector<1x8x16xf32>
    %40 = vector.shape_cast %28 : vector<8x16xf32> to vector<1x8x16xf32>
    %41 = vector.shape_cast %29 : vector<8x16xf32> to vector<1x8x16xf32>
    %42 = vector.shape_cast %30 : vector<8x16xf32> to vector<1x8x16xf32>
    %43 = vector.shape_cast %31 : vector<8x16xf32> to vector<1x8x16xf32>
    %44 = vector.shape_cast %32 : vector<8x16xf32> to vector<1x8x16xf32>
    %45 = vector.shape_cast %33 : vector<8x16xf32> to vector<1x8x16xf32>
    %46 = vector.shape_cast %34 : vector<8x16xf32> to vector<1x8x16xf32>
    %47 = vector.shape_cast %35 : vector<8x16xf32> to vector<1x8x16xf32>
    %48 = vector.shape_cast %36 : vector<8x16xf32> to vector<1x8x16xf32>
    %49 = vector.shape_cast %37 : vector<8x16xf32> to vector<1x8x16xf32>
    %50 = tpu.concatenate %38, %39, %40, %41, %42, %43, %44, %45, %46, %47, %48, %49 in 0 : vector<1x8x16xf32>, vector<1x8x16xf32>, vector<1x8x16xf32>, vector<1x8x16xf32>, vector<1x8x16xf32>, vector<1x8x16xf32>, vector<1x8x16xf32>, vector<1x8x16xf32>, vector<1x8x16xf32>, vector<1x8x16xf32>, vector<1x8x16xf32>, vector<1x8x16xf32> -> vector<12x8x16xf32>
    %51 = vector.extract_strided_slice %50 {offsets = [0, 0, 0], sizes = [4, 8, 16], strides = [1, 1, 1]} : vector<12x8x16xf32> to vector<4x8x16xf32>
    %52 = vector.extract_strided_slice %50 {offsets = [4, 0, 0], sizes = [4, 8, 16], strides = [1, 1, 1]} : vector<12x8x16xf32> to vector<4x8x16xf32>
    %53 = vector.extract_strided_slice %50 {offsets = [8, 0, 0], sizes = [4, 8, 16], strides = [1, 1, 1]} : vector<12x8x16xf32> to vector<4x8x16xf32>
    %c0_11 = arith.constant 0 : index
    %c0_12 = arith.constant 0 : index
    %c0_13 = arith.constant 0 : index
    %54 = vector.load %arg5[%c0_11, %c0_12, %c0_13] : memref<4x1x16xf32, #tpu.memory_space<vmem>>, vector<4x1x16xf32>
    %55 = arith.mulf %51, %51 : vector<4x8x16xf32>
    %cst_14 = arith.constant dense<0.000000e+00> : vector<4x8xf32>
    %56 = vector.multi_reduction <add>, %55, %cst_14 [2] : vector<4x8x16xf32> to vector<4x8xf32>
    %57 = vector.shape_cast %56 : vector<4x8xf32> to vector<4x8x1xf32>
    %cst_15 = arith.constant 1.000000e-24 : f32
    %58 = vector.broadcast %cst_15 : f32 to vector<4x8x1xf32>
    %59 = arith.maximumf %57, %58 : vector<4x8x1xf32>
    %60 = math.rsqrt %59 : vector<4x8x1xf32>
    %61 = vector.broadcast %60 : vector<4x8x1xf32> to vector<4x8x16xf32>
    %62 = arith.mulf %51, %61 : vector<4x8x16xf32>
    %63 = vector.broadcast %54 : vector<4x1x16xf32> to vector<4x8x16xf32>
    %64 = arith.mulf %62, %63 : vector<4x8x16xf32>
    %c0_16 = arith.constant 0 : index
    %c0_17 = arith.constant 0 : index
    %c0_18 = arith.constant 0 : index
    %65 = vector.load %arg6[%c0_16, %c0_17, %c0_18] : memref<4x1x16xf32, #tpu.memory_space<vmem>>, vector<4x1x16xf32>
    %66 = arith.mulf %52, %52 : vector<4x8x16xf32>
    %cst_19 = arith.constant dense<0.000000e+00> : vector<4x8xf32>
    %67 = vector.multi_reduction <add>, %66, %cst_19 [2] : vector<4x8x16xf32> to vector<4x8xf32>
    %68 = vector.shape_cast %67 : vector<4x8xf32> to vector<4x8x1xf32>
    %cst_20 = arith.constant 1.000000e-24 : f32
    %69 = vector.broadcast %cst_20 : f32 to vector<4x8x1xf32>
    %70 = arith.maximumf %68, %69 : vector<4x8x1xf32>
    %71 = math.rsqrt %70 : vector<4x8x1xf32>
    %72 = vector.broadcast %71 : vector<4x8x1xf32> to vector<4x8x16xf32>
    %73 = arith.mulf %52, %72 : vector<4x8x16xf32>
    %74 = vector.broadcast %65 : vector<4x1x16xf32> to vector<4x8x16xf32>
    %75 = arith.mulf %73, %74 : vector<4x8x16xf32>
    %76 = arith.truncf %64 : vector<4x8x16xf32> to vector<4x8x16xbf16>
    %77 = arith.truncf %75 : vector<4x8x16xf32> to vector<4x8x16xbf16>
    "tpu.trace_start"() <{level = 10 : i32, message = "hqd,hkd->hqk"}> : () -> ()
    %cst_21 = arith.constant dense<0.000000e+00> : vector<4x8x8xf32>
    %78 = tpu.matmul %76, %77, %cst_21 {dimension_numbers = #tpu.dot_dimension_numbers<[2], [2], [1], [1], [0, 0, 0, 1, 1, 1], [0], [0]>} : vector<4x8x16xbf16>, vector<4x8x16xbf16>, vector<4x8x8xf32> -> vector<4x8x8xf32>
    "tpu.trace_stop"() : () -> ()
    %cst_22 = arith.constant dense<0xFF800000> : vector<4x8xf32>
    %79 = vector.multi_reduction <maximumf>, %78, %cst_22 [2] : vector<4x8x8xf32> to vector<4x8xf32>
    %80 = vector.shape_cast %79 : vector<4x8xf32> to vector<4x8x1xf32>
    %81 = vector.broadcast %80 : vector<4x8x1xf32> to vector<4x8x8xf32>
    %82 = arith.subf %78, %81 : vector<4x8x8xf32>
    %83 = math.exp %82 : vector<4x8x8xf32>
    %cst_23 = arith.constant dense<0.000000e+00> : vector<4x8xf32>
    %84 = vector.multi_reduction <add>, %83, %cst_23 [2] : vector<4x8x8xf32> to vector<4x8xf32>
    %85 = vector.shape_cast %84 : vector<4x8xf32> to vector<4x8x1xf32>
    %86 = tpu.reciprocal %85 : vector<4x8x1xf32> -> vector<4x8x1xf32>
    %87 = vector.broadcast %86 : vector<4x8x1xf32> to vector<4x8x8xf32>
    %88 = arith.mulf %83, %87 : vector<4x8x8xf32>
    %89 = arith.truncf %88 : vector<4x8x8xf32> to vector<4x8x8xbf16>
    %90 = arith.truncf %53 : vector<4x8x16xf32> to vector<4x8x16xbf16>
    "tpu.trace_start"() <{level = 10 : i32, message = "hqk,hkd->hqd"}> : () -> ()
    %cst_24 = arith.constant dense<0.000000e+00> : vector<4x8x16xf32>
    %91 = tpu.matmul %89, %90, %cst_24 {dimension_numbers = #tpu.dot_dimension_numbers<[2], [1], [1], [2], [0, 0, 0, 1, 1, 2], [0], [0]>} : vector<4x8x8xbf16>, vector<4x8x16xbf16>, vector<4x8x16xf32> -> vector<4x8x16xf32>
    "tpu.trace_stop"() : () -> ()
    %92 = vector.extract_strided_slice %91 {offsets = [0, 0, 0], sizes = [1, 8, 16], strides = [1, 1, 1]} : vector<4x8x16xf32> to vector<1x8x16xf32>
    %93 = vector.shape_cast %92 : vector<1x8x16xf32> to vector<8x16xf32>
    %94 = vector.extract_strided_slice %91 {offsets = [1, 0, 0], sizes = [1, 8, 16], strides = [1, 1, 1]} : vector<4x8x16xf32> to vector<1x8x16xf32>
    %95 = vector.shape_cast %94 : vector<1x8x16xf32> to vector<8x16xf32>
    %96 = vector.extract_strided_slice %91 {offsets = [2, 0, 0], sizes = [1, 8, 16], strides = [1, 1, 1]} : vector<4x8x16xf32> to vector<1x8x16xf32>
    %97 = vector.shape_cast %96 : vector<1x8x16xf32> to vector<8x16xf32>
    %98 = vector.extract_strided_slice %91 {offsets = [3, 0, 0], sizes = [1, 8, 16], strides = [1, 1, 1]} : vector<4x8x16xf32> to vector<1x8x16xf32>
    %99 = vector.shape_cast %98 : vector<1x8x16xf32> to vector<8x16xf32>
    %100 = tpu.concatenate %93, %95, %97, %99 in 1 : vector<8x16xf32>, vector<8x16xf32>, vector<8x16xf32>, vector<8x16xf32> -> vector<8x64xf32>
    %101 = arith.truncf %100 : vector<8x64xf32> to vector<8x64xbf16>
    %c0_25 = arith.constant 0 : index
    %c0_26 = arith.constant 0 : index
    %102 = vector.load %arg4[%c0_25, %c0_26] : memref<64x32xbf16, #tpu.memory_space<vmem>>, vector<64x32xbf16>
    %cst_27 = arith.constant dense<0.000000e+00> : vector<8x32xf32>
    %103 = tpu.matmul %101, %102, %cst_27 {dimension_numbers = #tpu.dot_dimension_numbers<[1], [0], [0], [1], [0, 0, 1, 1], [], []>} : vector<8x64xbf16>, vector<64x32xbf16>, vector<8x32xf32> -> vector<8x32xf32>
    %104 = vector.extract_strided_slice %103 {offsets = [0, 0], sizes = [1, 32], strides = [1, 1]} : vector<8x32xf32> to vector<1x32xf32>
    %105 = vector.extract_strided_slice %103 {offsets = [1, 0], sizes = [1, 32], strides = [1, 1]} : vector<8x32xf32> to vector<1x32xf32>
    %106 = vector.extract_strided_slice %103 {offsets = [2, 0], sizes = [1, 32], strides = [1, 1]} : vector<8x32xf32> to vector<1x32xf32>
    %107 = vector.extract_strided_slice %103 {offsets = [3, 0], sizes = [1, 32], strides = [1, 1]} : vector<8x32xf32> to vector<1x32xf32>
    %108 = vector.extract_strided_slice %103 {offsets = [4, 0], sizes = [1, 32], strides = [1, 1]} : vector<8x32xf32> to vector<1x32xf32>
    %109 = vector.extract_strided_slice %103 {offsets = [5, 0], sizes = [1, 32], strides = [1, 1]} : vector<8x32xf32> to vector<1x32xf32>
    %110 = vector.extract_strided_slice %103 {offsets = [6, 0], sizes = [1, 32], strides = [1, 1]} : vector<8x32xf32> to vector<1x32xf32>
    %111 = vector.extract_strided_slice %103 {offsets = [7, 0], sizes = [1, 32], strides = [1, 1]} : vector<8x32xf32> to vector<1x32xf32>
    %112 = tpu.concatenate %104, %105, %106, %107, %108, %109, %110, %111 in 1 : vector<1x32xf32>, vector<1x32xf32>, vector<1x32xf32>, vector<1x32xf32>, vector<1x32xf32>, vector<1x32xf32>, vector<1x32xf32>, vector<1x32xf32> -> vector<1x256xf32>
    %c0_28 = arith.constant 0 : index
    %c0_29 = arith.constant 0 : index
    %c0_30 = arith.constant 0 : index
    %113 = vector.load %arg7[%c0_28, %c0_29, %c0_30] : memref<1x1x256xf32, #tpu.memory_space<vmem>>, vector<1x1x256xf32>
    %114 = vector.shape_cast %113 : vector<1x1x256xf32> to vector<1x256xf32>
    %115 = vector.shape_cast %112 : vector<1x256xf32> to vector<1x1x256xf32>
    tpu.vector_store %arg7[%c0_28, %c0_29, %c0_30], %115 {strides = array<i32>} : memref<1x1x256xf32, #tpu.memory_space<vmem>>, vector<1x1x256xf32>,
    return
  }
  func.func @transform_0(%arg0: i32) -> (i32, i32, i32) {
    %c0_i32 = arith.constant 0 : i32
    %c0_i32_0 = arith.constant 0 : i32
    %c0_i32_1 = arith.constant 0 : i32
    return %arg0, %c0_i32, %c0_i32_0 : i32, i32, i32
  }
  func.func @transform_1(%arg0: i32) -> (i32, i32) {
    %c0_i32 = arith.constant 0 : i32
    %c0_i32_0 = arith.constant 0 : i32
    %c0_i32_1 = arith.constant 0 : i32
    return %c0_i32, %c0_i32_0 : i32, i32
  }
  func.func @transform_2(%arg0: i32) -> (i32, i32) {
    %c0_i32 = arith.constant 0 : i32
    %c0_i32_0 = arith.constant 0 : i32
    %c0_i32_1 = arith.constant 0 : i32
    return %c0_i32, %c0_i32_0 : i32, i32
  }
  func.func @transform_3(%arg0: i32) -> (i32, i32) {
    %c0_i32 = arith.constant 0 : i32
    %c0_i32_0 = arith.constant 0 : i32
    %c0_i32_1 = arith.constant 0 : i32
    return %c0_i32, %c0_i32_0 : i32, i32
  }
  func.func @transform_4(%arg0: i32) -> (i32, i32, i32) {
    %c0_i32 = arith.constant 0 : i32
    %c0_i32_0 = arith.constant 0 : i32
    %c0_i32_1 = arith.constant 0 : i32
    %c0_i32_2 = arith.constant 0 : i32
    return %c0_i32, %c0_i32_0, %c0_i32_1 : i32, i32, i32
  }
  func.func @transform_5(%arg0: i32) -> (i32, i32, i32) {
    %c0_i32 = arith.constant 0 : i32
    %c0_i32_0 = arith.constant 0 : i32
    %c0_i32_1 = arith.constant 0 : i32
    %c0_i32_2 = arith.constant 0 : i32
    return %c0_i32, %c0_i32_0, %c0_i32_1 : i32, i32, i32
  }
  func.func @transform_6(%arg0: i32) -> (i32, i32, i32) {
    %c0_i32 = arith.constant 0 : i32
    %c0_i32_0 = arith.constant 0 : i32
    %c0_i32_1 = arith.constant 0 : i32
    return %arg0, %c0_i32, %c0_i32_0 : i32, i32, i32
  }
}

module attributes {stable_mosaic.version = 11 : i64} {
  func.func @_attention_kernel(%arg0: i32, %arg1: memref<1x8x32xf32, #tpu.memory_space<vmem>>, %arg2: memref<1x32xf32, #tpu.memory_space<vmem>>, %arg3: memref<32x192xbf16, #tpu.memory_space<vmem>>, %arg4: memref<64x32xbf16, #tpu.memory_space<vmem>>, %arg5: memref<4x1x16xf32, #tpu.memory_space<vmem>>, %arg6: memref<4x1x16xf32, #tpu.memory_space<vmem>>, %arg7: memref<1x1x256xf32, #tpu.memory_space<vmem>>) attributes {dimension_semantics = [#tpu.dimension_semantics<parallel>], iteration_bounds = array<i64: 2>, scalar_prefetch = 0 : i64, scratch_operands = 0 : i64, tpu.core_type = #tpu.core_type<tc>, window_params = [{transform_indices = @transform_0, window_bounds = array<i64: 1, 8, 32>}, {pipeline_mode = #tpu.pipeline_mode<synchronous>, transform_indices = @transform_1, window_bounds = array<i64: 1, 32>}, {pipeline_mode = #tpu.pipeline_mode<synchronous>, transform_indices = @transform_2, window_bounds = array<i64: 32, 192>}, {pipeline_mode = #tpu.pipeline_mode<synchronous>, transform_indices = @transform_3, window_bounds = array<i64: 64, 32>}, {pipeline_mode = #tpu.pipeline_mode<synchronous>, transform_indices = @transform_4, window_bounds = array<i64: 4, 1, 16>}, {pipeline_mode = #tpu.pipeline_mode<synchronous>, transform_indices = @transform_5, window_bounds = array<i64: 4, 1, 16>}, {transform_indices = @transform_6, window_bounds = array<i64: 1, 1, 256>}]} {
    %c0 = arith.constant 0 : index
    %c0_0 = arith.constant 0 : index
    %c0_1 = arith.constant 0 : index
    %0 = vector.load %arg1[%c0, %c0_0, %c0_1] : memref<1x8x32xf32, #tpu.memory_space<vmem>>, vector<1x8x32xf32>
    %1 = vector.shape_cast %0 : vector<1x8x32xf32> to vector<8x32xf32>
    %cst = arith.constant dense<0.000000e+00> : vector<8xf32>
    %2 = vector.multi_reduction <add>, %1, %cst [1] : vector<8x32xf32> to vector<8xf32>
    %3 = vector.shape_cast %2 : vector<8xf32> to vector<8x1xf32>
    %cst_2 = arith.constant 3.200000e+01 : f32
    %4 = vector.broadcast %cst_2 : f32 to vector<8x1xf32>
    %5 = arith.divf %3, %4 : vector<8x1xf32>
    %6 = vector.broadcast %5 : vector<8x1xf32> to vector<8x32xf32>
    %7 = arith.subf %1, %6 : vector<8x32xf32>
    %8 = arith.mulf %7, %7 : vector<8x32xf32>
    %cst_3 = arith.constant dense<0.000000e+00> : vector<8xf32>
    %9 = vector.multi_reduction <add>, %8, %cst_3 [1] : vector<8x32xf32> to vector<8xf32>
    %10 = vector.shape_cast %9 : vector<8xf32> to vector<8x1xf32>
    %cst_4 = arith.constant 3.200000e+01 : f32
    %11 = vector.broadcast %cst_4 : f32 to vector<8x1xf32>
    %12 = arith.divf %10, %11 : vector<8x1xf32>
    %13 = vector.broadcast %5 : vector<8x1xf32> to vector<8x32xf32>
    %14 = arith.subf %1, %13 : vector<8x32xf32>
    %cst_5 = arith.constant 9.99999974E-6 : f32
    %15 = vector.broadcast %cst_5 : f32 to vector<8x1xf32>
    %16 = arith.addf %12, %15 : vector<8x1xf32>
    %17 = math.rsqrt %16 : vector<8x1xf32>
    %18 = vector.broadcast %17 : vector<8x1xf32> to vector<8x32xf32>
    %19 = arith.mulf %14, %18 : vector<8x32xf32>
    %c0_6 = arith.constant 0 : index
    %c0_7 = arith.constant 0 : index
    %20 = vector.load %arg2[%c0_6, %c0_7] : memref<1x32xf32, #tpu.memory_space<vmem>>, vector<1x32xf32>
    %21 = vector.broadcast %20 : vector<1x32xf32> to vector<8x32xf32>
    %22 = arith.mulf %19, %21 : vector<8x32xf32>
    %23 = arith.truncf %22 : vector<8x32xf32> to vector<8x32xbf16>
    %c0_8 = arith.constant 0 : index
    %c0_9 = arith.constant 0 : index
    %24 = vector.load %arg3[%c0_8, %c0_9] : memref<32x192xbf16, #tpu.memory_space<vmem>>, vector<32x192xbf16>
    %cst_10 = arith.constant dense<0.000000e+00> : vector<8x192xf32>
    %25 = tpu.matmul %23, %24, %cst_10 {dimension_numbers = #tpu.dot_dimension_numbers<[1], [0], [0], [1], [0, 0, 1, 1], [], []>} : vector<8x32xbf16>, vector<32x192xbf16>, vector<8x192xf32> -> vector<8x192xf32>
    %26 = vector.extract_strided_slice %25 {offsets = [0, 0], sizes = [8, 16], strides = [1, 1]} : vector<8x192xf32> to vector<8x16xf32>
    %27 = vector.extract_strided_slice %25 {offsets = [0, 16], sizes = [8, 16], strides = [1, 1]} : vector<8x192xf32> to vector<8x16xf32>
    %28 = vector.extract_strided_slice %25 {offsets = [0, 32], sizes = [8, 16], strides = [1, 1]} : vector<8x192xf32> to vector<8x16xf32>
    %29 = vector.extract_strided_slice %25 {offsets = [0, 48], sizes = [8, 16], strides = [1, 1]} : vector<8x192xf32> to vector<8x16xf32>
    %30 = vector.extract_strided_slice %25 {offsets = [0, 64], sizes = [8, 16], strides = [1, 1]} : vector<8x192xf32> to vector<8x16xf32>
    %31 = vector.extract_strided_slice %25 {offsets = [0, 80], sizes = [8, 16], strides = [1, 1]} : vector<8x192xf32> to vector<8x16xf32>
    %32 = vector.extract_strided_slice %25 {offsets = [0, 96], sizes = [8, 16], strides = [1, 1]} : vector<8x192xf32> to vector<8x16xf32>
    %33 = vector.extract_strided_slice %25 {offsets = [0, 112], sizes = [8, 16], strides = [1, 1]} : vector<8x192xf32> to vector<8x16xf32>
    %34 = vector.extract_strided_slice %25 {offsets = [0, 128], sizes = [8, 16], strides = [1, 1]} : vector<8x192xf32> to vector<8x16xf32>
    %35 = vector.extract_strided_slice %25 {offsets = [0, 144], sizes = [8, 16], strides = [1, 1]} : vector<8x192xf32> to vector<8x16xf32>
    %36 = vector.extract_strided_slice %25 {offsets = [0, 160], sizes = [8, 16], strides = [1, 1]} : vector<8x192xf32> to vector<8x16xf32>
    %37 = vector.extract_strided_slice %25 {offsets = [0, 176], sizes = [8, 16], strides = [1, 1]} : vector<8x192xf32> to vector<8x16xf32>
    %38 = vector.shape_cast %26 : vector<8x16xf32> to vector<1x8x16xf32>
    %39 = vector.shape_cast %27 : vector<8x16xf32> to vector<1x8x16xf32>
    %40 = vector.shape_cast %28 : vector<8x16xf32> to vector<1x8x16xf32>
    %41 = vector.shape_cast %29 : vector<8x16xf32> to vector<1x8x16xf32>
    %42 = vector.shape_cast %30 : vector<8x16xf32> to vector<1x8x16xf32>
    %43 = vector.shape_cast %31 : vector<8x16xf32> to vector<1x8x16xf32>
    %44 = vector.shape_cast %32 : vector<8x16xf32> to vector<1x8x16xf32>
    %45 = vector.shape_cast %33 : vector<8x16xf32> to vector<1x8x16xf32>
    %46 = vector.shape_cast %34 : vector<8x16xf32> to vector<1x8x16xf32>
    %47 = vector.shape_cast %35 : vector<8x16xf32> to vector<1x8x16xf32>
    %48 = vector.shape_cast %36 : vector<8x16xf32> to vector<1x8x16xf32>
    %49 = vector.shape_cast %37 : vector<8x16xf32> to vector<1x8x16xf32>
    %50 = tpu.concatenate %38, %39, %40, %41, %42, %43, %44, %45, %46, %47, %48, %49 in 0 : vector<1x8x16xf32>, vector<1x8x16xf32>, vector<1x8x16xf32>, vector<1x8x16xf32>, vector<1x8x16xf32>, vector<1x8x16xf32>, vector<1x8x16xf32>, vector<1x8x16xf32>, vector<1x8x16xf32>, vector<1x8x16xf32>, vector<1x8x16xf32>, vector<1x8x16xf32> -> vector<12x8x16xf32>
    %51 = vector.extract_strided_slice %50 {offsets = [0, 0, 0], sizes = [4, 8, 16], strides = [1, 1, 1]} : vector<12x8x16xf32> to vector<4x8x16xf32>
    %52 = vector.extract_strided_slice %50 {offsets = [4, 0, 0], sizes = [4, 8, 16], strides = [1, 1, 1]} : vector<12x8x16xf32> to vector<4x8x16xf32>
    %53 = vector.extract_strided_slice %50 {offsets = [8, 0, 0], sizes = [4, 8, 16], strides = [1, 1, 1]} : vector<12x8x16xf32> to vector<4x8x16xf32>
    %c0_11 = arith.constant 0 : index
    %c0_12 = arith.constant 0 : index
    %c0_13 = arith.constant 0 : index
    %54 = vector.load %arg5[%c0_11, %c0_12, %c0_13] : memref<4x1x16xf32, #tpu.memory_space<vmem>>, vector<4x1x16xf32>
    %55 = arith.mulf %51, %51 : vector<4x8x16xf32>
    %cst_14 = arith.constant dense<0.000000e+00> : vector<4x8xf32>
    %56 = vector.multi_reduction <add>, %55, %cst_14 [2] : vector<4x8x16xf32> to vector<4x8xf32>
    %57 = vector.shape_cast %56 : vector<4x8xf32> to vector<4x8x1xf32>
    %cst_15 = arith.constant 1.000000e-24 : f32
    %58 = vector.broadcast %cst_15 : f32 to vector<4x8x1xf32>
    %59 = arith.maximumf %57, %58 : vector<4x8x1xf32>
    %60 = math.rsqrt %59 : vector<4x8x1xf32>
    %61 = vector.broadcast %60 : vector<4x8x1xf32> to vector<4x8x16xf32>
    %62 = arith.mulf %51, %61 : vector<4x8x16xf32>
    %63 = vector.broadcast %54 : vector<4x1x16xf32> to vector<4x8x16xf32>
    %64 = arith.mulf %62, %63 : vector<4x8x16xf32>
    %c0_16 = arith.constant 0 : index
    %c0_17 = arith.constant 0 : index
    %c0_18 = arith.constant 0 : index
    %65 = vector.load %arg6[%c0_16, %c0_17, %c0_18] : memref<4x1x16xf32, #tpu.memory_space<vmem>>, vector<4x1x16xf32>
    %66 = arith.mulf %52, %52 : vector<4x8x16xf32>
    %cst_19 = arith.constant dense<0.000000e+00> : vector<4x8xf32>
    %67 = vector.multi_reduction <add>, %66, %cst_19 [2] : vector<4x8x16xf32> to vector<4x8xf32>
    %68 = vector.shape_cast %67 : vector<4x8xf32> to vector<4x8x1xf32>
    %cst_20 = arith.constant 1.000000e-24 : f32
    %69 = vector.broadcast %cst_20 : f32 to vector<4x8x1xf32>
    %70 = arith.maximumf %68, %69 : vector<4x8x1xf32>
    %71 = math.rsqrt %70 : vector<4x8x1xf32>
    %72 = vector.broadcast %71 : vector<4x8x1xf32> to vector<4x8x16xf32>
    %73 = arith.mulf %52, %72 : vector<4x8x16xf32>
    %74 = vector.broadcast %65 : vector<4x1x16xf32> to vector<4x8x16xf32>
    %75 = arith.mulf %73, %74 : vector<4x8x16xf32>
    %76 = arith.truncf %64 : vector<4x8x16xf32> to vector<4x8x16xbf16>
    %77 = arith.truncf %75 : vector<4x8x16xf32> to vector<4x8x16xbf16>
    "tpu.trace_start"() <{level = 10 : i32, message = "hqd,hkd->hqk"}> : () -> ()
    %cst_21 = arith.constant dense<0.000000e+00> : vector<4x8x8xf32>
    %78 = tpu.matmul %76, %77, %cst_21 {dimension_numbers = #tpu.dot_dimension_numbers<[2], [2], [1], [1], [0, 0, 0, 1, 1, 1], [0], [0]>} : vector<4x8x16xbf16>, vector<4x8x16xbf16>, vector<4x8x8xf32> -> vector<4x8x8xf32>
    "tpu.trace_stop"() : () -> ()
    %cst_22 = arith.constant dense<0xFF800000> : vector<4x8xf32>
    %79 = vector.multi_reduction <maximumf>, %78, %cst_22 [2] : vector<4x8x8xf32> to vector<4x8xf32>
    %80 = vector.shape_cast %79 : vector<4x8xf32> to vector<4x8x1xf32>
    %81 = vector.broadcast %80 : vector<4x8x1xf32> to vector<4x8x8xf32>
    %82 = arith.subf %78, %81 : vector<4x8x8xf32>
    %83 = math.exp %82 : vector<4x8x8xf32>
    %cst_23 = arith.constant dense<0.000000e+00> : vector<4x8xf32>
    %84 = vector.multi_reduction <add>, %83, %cst_23 [2] : vector<4x8x8xf32> to vector<4x8xf32>
    %85 = vector.shape_cast %84 : vector<4x8xf32> to vector<4x8x1xf32>
    %86 = tpu.reciprocal %85 : vector<4x8x1xf32> -> vector<4x8x1xf32>
    %87 = vector.broadcast %86 : vector<4x8x1xf32> to vector<4x8x8xf32>
    %88 = arith.mulf %83, %87 : vector<4x8x8xf32>
    %89 = arith.truncf %88 : vector<4x8x8xf32> to vector<4x8x8xbf16>
    %90 = arith.truncf %53 : vector<4x8x16xf32> to vector<4x8x16xbf16>
    "tpu.trace_start"() <{level = 10 : i32, message = "hqk,hkd->hqd"}> : () -> ()
    %cst_24 = arith.constant dense<0.000000e+00> : vector<4x8x16xf32>
    %91 = tpu.matmul %89, %90, %cst_24 {dimension_numbers = #tpu.dot_dimension_numbers<[2], [1], [1], [2], [0, 0, 0, 1, 1, 2], [0], [0]>} : vector<4x8x8xbf16>, vector<4x8x16xbf16>, vector<4x8x16xf32> -> vector<4x8x16xf32>
    "tpu.trace_stop"() : () -> ()
    %92 = vector.extract_strided_slice %91 {offsets = [0, 0, 0], sizes = [1, 8, 16], strides = [1, 1, 1]} : vector<4x8x16xf32> to vector<1x8x16xf32>
    %93 = vector.shape_cast %92 : vector<1x8x16xf32> to vector<8x16xf32>
    %94 = vector.extract_strided_slice %91 {offsets = [1, 0, 0], sizes = [1, 8, 16], strides = [1, 1, 1]} : vector<4x8x16xf32> to vector<1x8x16xf32>
    %95 = vector.shape_cast %94 : vector<1x8x16xf32> to vector<8x16xf32>
    %96 = vector.extract_strided_slice %91 {offsets = [2, 0, 0], sizes = [1, 8, 16], strides = [1, 1, 1]} : vector<4x8x16xf32> to vector<1x8x16xf32>
    %97 = vector.shape_cast %96 : vector<1x8x16xf32> to vector<8x16xf32>
    %98 = vector.extract_strided_slice %91 {offsets = [3, 0, 0], sizes = [1, 8, 16], strides = [1, 1, 1]} : vector<4x8x16xf32> to vector<1x8x16xf32>
    %99 = vector.shape_cast %98 : vector<1x8x16xf32> to vector<8x16xf32>
    %100 = tpu.concatenate %93, %95, %97, %99 in 1 : vector<8x16xf32>, vector<8x16xf32>, vector<8x16xf32>, vector<8x16xf32> -> vector<8x64xf32>
    %101 = arith.truncf %100 : vector<8x64xf32> to vector<8x64xbf16>
    %c0_25 = arith.constant 0 : index
    %c0_26 = arith.constant 0 : index
    %102 = vector.load %arg4[%c0_25, %c0_26] : memref<64x32xbf16, #tpu.memory_space<vmem>>, vector<64x32xbf16>
    %cst_27 = arith.constant dense<0.000000e+00> : vector<8x32xf32>
    %103 = tpu.matmul %101, %102, %cst_27 {dimension_numbers = #tpu.dot_dimension_numbers<[1], [0], [0], [1], [0, 0, 1, 1], [], []>} : vector<8x64xbf16>, vector<64x32xbf16>, vector<8x32xf32> -> vector<8x32xf32>
    %104 = vector.extract_strided_slice %103 {offsets = [0, 0], sizes = [1, 32], strides = [1, 1]} : vector<8x32xf32> to vector<1x32xf32>
    %105 = vector.extract_strided_slice %103 {offsets = [1, 0], sizes = [1, 32], strides = [1, 1]} : vector<8x32xf32> to vector<1x32xf32>
    %106 = vector.extract_strided_slice %103 {offsets = [2, 0], sizes = [1, 32], strides = [1, 1]} : vector<8x32xf32> to vector<1x32xf32>
    %107 = vector.extract_strided_slice %103 {offsets = [3, 0], sizes = [1, 32], strides = [1, 1]} : vector<8x32xf32> to vector<1x32xf32>
    %108 = vector.extract_strided_slice %103 {offsets = [4, 0], sizes = [1, 32], strides = [1, 1]} : vector<8x32xf32> to vector<1x32xf32>
    %109 = vector.extract_strided_slice %103 {offsets = [5, 0], sizes = [1, 32], strides = [1, 1]} : vector<8x32xf32> to vector<1x32xf32>
    %110 = vector.extract_strided_slice %103 {offsets = [6, 0], sizes = [1, 32], strides = [1, 1]} : vector<8x32xf32> to vector<1x32xf32>
    %111 = vector.extract_strided_slice %103 {offsets = [7, 0], sizes = [1, 32], strides = [1, 1]} : vector<8x32xf32> to vector<1x32xf32>
    %112 = tpu.concatenate %104, %105, %106, %107, %108, %109, %110, %111 in 1 : vector<1x32xf32>, vector<1x32xf32>, vector<1x32xf32>, vector<1x32xf32>, vector<1x32xf32>, vector<1x32xf32>, vector<1x32xf32>, vector<1x32xf32> -> vector<1x256xf32>
    %c0_28 = arith.constant 0 : index
    %c0_29 = arith.constant 0 : index
    %c0_30 = arith.constant 0 : index
    %113 = vector.load %arg7[%c0_28, %c0_29, %c0_30] : memref<1x1x256xf32, #tpu.memory_space<vmem>>, vector<1x1x256xf32>
    %114 = vector.shape_cast %113 : vector<1x1x256xf32> to vector<1x256xf32>
    %115 = vector.shape_cast %112 : vector<1x256xf32> to vector<1x1x256xf32>
    tpu.vector_store %arg7[%c0_28, %c0_29, %c0_30], %115 {strides = array<i32>} : memref<1x1x256xf32, #tpu.memory_space<vmem>>, vector<1x1x256xf32>,
    return
  }
  func.func @transform_0(%arg0: i32) -> (i32, i32, i32) {
    %c0_i32 = arith.constant 0 : i32
    %c0_i32_0 = arith.constant 0 : i32
    %c0_i32_1 = arith.constant 0 : i32
    return %arg0, %c0_i32, %c0_i32_0 : i32, i32, i32
  }
  func.func @transform_1(%arg0: i32) -> (i32, i32) {
    %c0_i32 = arith.constant 0 : i32
    %c0_i32_0 = arith.constant 0 : i32
    %c0_i32_1 = arith.constant 0 : i32
    return %c0_i32, %c0_i32_0 : i32, i32
  }
  func.func @transform_2(%arg0: i32) -> (i32, i32) {
    %c0_i32 = arith.constant 0 : i32
    %c0_i32_0 = arith.constant 0 : i32
    %c0_i32_1 = arith.constant 0 : i32
    return %c0_i32, %c0_i32_0 : i32, i32
  }
  func.func @transform_3(%arg0: i32) -> (i32, i32) {
    %c0_i32 = arith.constant 0 : i32
    %c0_i32_0 = arith.constant 0 : i32
    %c0_i32_1 = arith.constant 0 : i32
    return %c0_i32, %c0_i32_0 : i32, i32
  }
  func.func @transform_4(%arg0: i32) -> (i32, i32, i32) {
    %c0_i32 = arith.constant 0 : i32
    %c0_i32_0 = arith.constant 0 : i32
    %c0_i32_1 = arith.constant 0 : i32
    %c0_i32_2 = arith.constant 0 : i32
    return %c0_i32, %c0_i32_0, %c0_i32_1 : i32, i32, i32
  }
  func.func @transform_5(%arg0: i32) -> (i32, i32, i32) {
    %c0_i32 = arith.constant 0 : i32
    %c0_i32_0 = arith.constant 0 : i32
    %c0_i32_1 = arith.constant 0 : i32
    %c0_i32_2 = arith.constant 0 : i32
    return %c0_i32, %c0_i32_0, %c0_i32_1 : i32, i32, i32
  }
  func.func @transform_6(%arg0: i32) -> (i32, i32, i32) {
    %c0_i32 = arith.constant 0 : i32
    %c0_i32_0 = arith.constant 0 : i32
    %c0_i32_1 = arith.constant 0 : i32
    return %arg0, %c0_i32, %c0_i32_0 : i32, i32, i32
  }
}

</mosaic_0001>

<llo_original>
// kernel: tpu_custom_call.1
$region0: #{tpu_custom_call.1}
  #allocation0 [shape = 'u32[]', space=smem, size = 0x4, offset = 0x4, fixed_abs, tag = 'smem constant byte address 0x4 - core index']
  #allocation1 [shape = 'u32[144,128]{1,0:T(1,128)}', space=vmem, size = 0x12000, scoped, tag = 'internal scratch']
  %s0 = inlined_call_operand.vmem [shape: f32[2,8,32], index: 0, kind: input, shape index: {}]
  %s1 = inlined_call_operand.vmem [shape: f32[1,32], index: 1, kind: input, shape index: {}]
  %s2 = inlined_call_operand.vmem [shape: bf16[32,192], index: 2, kind: input, shape index: {}]
  %s3 = inlined_call_operand.vmem [shape: bf16[64,32], index: 3, kind: input, shape index: {}]
  %s4 = inlined_call_operand.vmem [shape: f32[4,1,16], index: 4, kind: input, shape index: {}]
  %s5 = inlined_call_operand.vmem [shape: f32[4,1,16], index: 5, kind: input, shape index: {}]
  %s6 = inlined_call_operand.hbm [shape: f32[2,1,256], index: 6, kind: output, shape index: {}]
  %s7 = sld [smem:[#allocation0]]
  $region57: #{tpu_custom_call.1} parent=0
    _
  %s9 = ssub.s32 1, %s7
  %s10 = scalar_select 0, %s9, %s7
  $region1: #{tpu_custom_call.1} parent=0
    #allocation2 [shape = 'u8[2048]{0}', space=vmem, size = 0x800, scoped, tag = 'output window, operand 0']
    #allocation3 [shape = 's32[2]{0}', space=sflag, size = 0x8, scoped, tag = 'scoped memory for tpu_custom_call.1']
    %11 = vsyncpa [#allocation3], 0
    %s12 = scalar_lea.sflag [#allocation3], 1
    %13 = vsyncpa %s12, 0
    loop: start=0, step=1, limit=4
    $region2: #{tpu_custom_call.1} parent=1 // loop_pre_header
      _
    $region3: #{tpu_custom_call.1} parent=1 // loop_header
      %s15 = sphi 0, %s19
      %p16 = scmp.ge.s32.totalorder %s15, 4
      %s25 = sphi 0, %s27
      %s28 = sphi 0, %s25
      %s29 = sphi 0, %s28
      %s45 = sphi 0, %s29
      %s49 = sphi 0, %s49
      %s51 = sphi 0, %s49
      %s52 = sphi 0, %s51
      %s66 = sphi 0, %s52
      %s70 = sphi 0, %s70
      %s72 = sphi 0, %s70
      %s73 = sphi 0, %s72
      %s87 = sphi 0, %s73
      %s91 = sphi 0, %s91
      %s93 = sphi 0, %s91
      %s94 = sphi 0, %s93
      %s108 = sphi 0, %s94
      %s112 = sphi 0, %s112
      %s114 = sphi 0, %s112
      %s115 = sphi 0, %s114
      %s129 = sphi 0, %s115
      %s133 = sphi 0, %s133
      %s135 = sphi 0, %s133
      %s136 = sphi 0, %s135
      %s150 = sphi 0, %s136
      %s156 = sphi 0, %s158
      %s159 = sphi 0, %s156
      %s160 = sphi 0, %s159
      %s176 = sphi 0, %s160
    $region4: #{tpu_custom_call.1} parent=1 // loop_header_branch
      %18 = sbr.rel (%p16) target = $region8
    $region5: #{tpu_custom_call.1} parent=1 // loop_body
      %s20 = ssub.s32 %s15, 1
      %s21 = ssub.s32 %s15, 2
      %s22 = sadd.s32 %s15, 1
      %s23 = ssub.s32 %s15, %s22
      %p24 = scmp.eq.s32.totalorder %s23, 0
      %s26 = sadd.s32 %s25, 1
      %s27 = scalar_select %p24, %s25, %s26
      %p30 = pneg %p24
      %p31 = scmp.eq.s32.totalorder %s15, 1
      %p32 = por %p30, %p31
      %p33 = scmp.ne.s32.totalorder %s25, %s28
      %p34 = scmp.eq.s32.totalorder %s15, 0
      %p35 = por %p33, %p34
      %p36 = scmp.ne.s32.totalorder %s25, %s28
      %p37 = scmp.eq.s32.totalorder %s20, 1
      %p38 = por %p36, %p37
      %p39 = scmp.ne.s32.totalorder %s28, %s29
      %p40 = scmp.eq.s32.totalorder %s20, 0
      %p41 = por %p39, %p40
      %p42 = scmp.ne.s32.totalorder %s28, %s29
      %p43 = scmp.eq.s32.totalorder %s21, 1
      %p44 = por %p42, %p43
      %p46 = scmp.ne.s32.totalorder %s29, %s45
      %p47 = scmp.eq.s32.totalorder %s21, 0
      %p48 = por %p46, %p47
      %s50 = sadd.s32 %s49, 1
      %p53 = scmp.eq.s32.totalorder %s15, 1
      %p54 = scmp.ne.s32.totalorder %s49, %s51
      %p55 = scmp.eq.s32.totalorder %s15, 0
      %p56 = por %p54, %p55
      %p57 = scmp.ne.s32.totalorder %s49, %s51
      %p58 = scmp.eq.s32.totalorder %s20, 1
      %p59 = por %p57, %p58
      %p60 = scmp.ne.s32.totalorder %s51, %s52
      %p61 = scmp.eq.s32.totalorder %s20, 0
      %p62 = por %p60, %p61
      %p63 = scmp.ne.s32.totalorder %s51, %s52
      %p64 = scmp.eq.s32.totalorder %s21, 1
      %p65 = por %p63, %p64
      %p67 = scmp.ne.s32.totalorder %s52, %s66
      %p68 = scmp.eq.s32.totalorder %s21, 0
      %p69 = por %p67, %p68
      %s71 = sadd.s32 %s70, 1
      %p74 = scmp.eq.s32.totalorder %s15, 1
      %p75 = scmp.ne.s32.totalorder %s70, %s72
      %p76 = scmp.eq.s32.totalorder %s15, 0
      %p77 = por %p75, %p76
      %p78 = scmp.ne.s32.totalorder %s70, %s72
      %p79 = scmp.eq.s32.totalorder %s20, 1
      %p80 = por %p78, %p79
      %p81 = scmp.ne.s32.totalorder %s72, %s73
      %p82 = scmp.eq.s32.totalorder %s20, 0
      %p83 = por %p81, %p82
      %p84 = scmp.ne.s32.totalorder %s72, %s73
      %p85 = scmp.eq.s32.totalorder %s21, 1
      %p86 = por %p84, %p85
      %p88 = scmp.ne.s32.totalorder %s73, %s87
      %p89 = scmp.eq.s32.totalorder %s21, 0
      %p90 = por %p88, %p89
      %s92 = sadd.s32 %s91, 1
      %p95 = scmp.eq.s32.totalorder %s15, 1
      %p96 = scmp.ne.s32.totalorder %s91, %s93
      %p97 = scmp.eq.s32.totalorder %s15, 0
      %p98 = por %p96, %p97
      %p99 = scmp.ne.s32.totalorder %s91, %s93
      %p100 = scmp.eq.s32.totalorder %s20, 1
      %p101 = por %p99, %p100
      %p102 = scmp.ne.s32.totalorder %s93, %s94
      %p103 = scmp.eq.s32.totalorder %s20, 0
      %p104 = por %p102, %p103
      %p105 = scmp.ne.s32.totalorder %s93, %s94
      %p106 = scmp.eq.s32.totalorder %s21, 1
      %p107 = por %p105, %p106
      %p109 = scmp.ne.s32.totalorder %s94, %s108
      %p110 = scmp.eq.s32.totalorder %s21, 0
      %p111 = por %p109, %p110
      %s113 = sadd.s32 %s112, 1
      %p116 = scmp.eq.s32.totalorder %s15, 1
      %p117 = scmp.ne.s32.totalorder %s112, %s114
      %p118 = scmp.eq.s32.totalorder %s15, 0
      %p119 = por %p117, %p118
      %p120 = scmp.ne.s32.totalorder %s112, %s114
      %p121 = scmp.eq.s32.totalorder %s20, 1
      %p122 = por %p120, %p121
      %p123 = scmp.ne.s32.totalorder %s114, %s115
      %p124 = scmp.eq.s32.totalorder %s20, 0
      %p125 = por %p123, %p124
      %p126 = scmp.ne.s32.totalorder %s114, %s115
      %p127 = scmp.eq.s32.totalorder %s21, 1
      %p128 = por %p126, %p127
      %p130 = scmp.ne.s32.totalorder %s115, %s129
      %p131 = scmp.eq.s32.totalorder %s21, 0
      %p132 = por %p130, %p131
      %s134 = sadd.s32 %s133, 1
      %p137 = scmp.eq.s32.totalorder %s15, 1
      %p138 = scmp.ne.s32.totalorder %s133, %s135
      %p139 = scmp.eq.s32.totalorder %s15, 0
      %p140 = por %p138, %p139
      %p141 = scmp.ne.s32.totalorder %s133, %s135
      %p142 = scmp.eq.s32.totalorder %s20, 1
      %p143 = por %p141, %p142
      %p144 = scmp.ne.s32.totalorder %s135, %s136
      %p145 = scmp.eq.s32.totalorder %s20, 0
      %p146 = por %p144, %p145
      %p147 = scmp.ne.s32.totalorder %s135, %s136
      %p148 = scmp.eq.s32.totalorder %s21, 1
      %p149 = por %p147, %p148
      %p151 = scmp.ne.s32.totalorder %s136, %s150
      %p152 = scmp.eq.s32.totalorder %s21, 0
      %p153 = por %p151, %p152
      %s154 = ssub.s32 %s15, %s22
      %p155 = scmp.eq.s32.totalorder %s154, 0
      %s157 = sadd.s32 %s156, 1
      %s158 = scalar_select %p155, %s156, %s157
      %p161 = pneg %p155
      %p162 = scmp.eq.s32.totalorder %s15, 1
      %p163 = por %p161, %p162
      %p164 = scmp.ne.s32.totalorder %s156, %s159
      %p165 = scmp.eq.s32.totalorder %s15, 0
      %p166 = por %p164, %p165
      %p167 = scmp.ne.s32.totalorder %s156, %s159
      %p168 = scmp.eq.s32.totalorder %s20, 1
      %p169 = por %p167, %p168
      %p170 = scmp.ne.s32.totalorder %s159, %s160
      %p171 = scmp.eq.s32.totalorder %s20, 0
      %p172 = por %p170, %p171
      %p173 = scmp.ne.s32.totalorder %s159, %s160
      %p174 = scmp.eq.s32.totalorder %s21, 1
      %p175 = por %p173, %p174
      %p177 = scmp.ne.s32.totalorder %s160, %s176
      %p178 = scmp.eq.s32.totalorder %s21, 0
      %p179 = por %p177, %p178
      %p180 = scmp.le.s32.totalorder 1, %s15
      %p181 = scmp.lt.s32.totalorder %s15, 3
      %p182 = pnand %p180, %p181
      %p183 = pneg %p182
      // Predicated region
      $region9: #{tpu_custom_call.1} parent=5 // pred_check
        _
      $region10: #{tpu_custom_call.1} parent=5 // pred_check_branch
        %185 = sbr.rel (%p182) target = $region12
      $region11: #{tpu_custom_call.1} parent=5 // pred_region
        %s186 = ssub.s32 %s15, 1
        // Predicated region
        $region13: #{tpu_custom_call.1} parent=11 // pred_check
          %p187 = pneg %p62
        $region14: #{tpu_custom_call.1} parent=11 // pred_check_branch
          %189 = sbr.rel (%p187) target = $region16
        $region15: #{tpu_custom_call.1} parent=11 // pred_region
          _
        $region16: #{tpu_custom_call.1} parent=11 // pred_fallthru
          _
        // Predicated region
        $region17: #{tpu_custom_call.1} parent=11 // pred_check
          %p190 = pneg %p83
        $region18: #{tpu_custom_call.1} parent=11 // pred_check_branch
          %192 = sbr.rel (%p190) target = $region20
        $region19: #{tpu_custom_call.1} parent=11 // pred_region
          _
        $region20: #{tpu_custom_call.1} parent=11 // pred_fallthru
          _
        // Predicated region
        $region21: #{tpu_custom_call.1} parent=11 // pred_check
          %p193 = pneg %p104
        $region22: #{tpu_custom_call.1} parent=11 // pred_check_branch
          %195 = sbr.rel (%p193) target = $region24
        $region23: #{tpu_custom_call.1} parent=11 // pred_region
          _
        $region24: #{tpu_custom_call.1} parent=11 // pred_fallthru
          _
        // Predicated region
        $region25: #{tpu_custom_call.1} parent=11 // pred_check
          %p196 = pneg %p125
        $region26: #{tpu_custom_call.1} parent=11 // pred_check_branch
          %198 = sbr.rel (%p196) target = $region28
        $region27: #{tpu_custom_call.1} parent=11 // pred_region
          _
        $region28: #{tpu_custom_call.1} parent=11 // pred_fallthru
          _
        // Predicated region
        $region29: #{tpu_custom_call.1} parent=11 // pred_check
          %p199 = pneg %p146
        $region30: #{tpu_custom_call.1} parent=11 // pred_check_branch
          %201 = sbr.rel (%p199) target = $region32
        $region31: #{tpu_custom_call.1} parent=11 // pred_region
          _
        $region32: #{tpu_custom_call.1} parent=11 // pred_fallthru
          _
      $region12: #{tpu_custom_call.1} parent=5 // pred_fallthru
        _
      %p202 = scmp.lt.s32.totalorder %s15, 2
      // Predicated region
      $region33: #{tpu_custom_call.1} parent=5 // pred_check
        %p203 = pneg %p202
      $region34: #{tpu_custom_call.1} parent=5 // pred_check_branch
        %205 = sbr.rel (%p203) target = $region36
      $region35: #{tpu_custom_call.1} parent=5 // pred_region
        // Predicated region
        $region37: #{tpu_custom_call.1} parent=35 // pred_check
          %p206 = pneg %p35
        $region38: #{tpu_custom_call.1} parent=35 // pred_check_branch
          %208 = sbr.rel (%p206) target = $region40
        $region39: #{tpu_custom_call.1} parent=35 // pred_region
          %p209 = scmp.lt.s32.totalorder %s15, 1
          %s210 = scalar_select %p209, %s15, 1
          %s211 = smul.addr %s210, 8
          %s212 = scalar_lea.vmem %s0, %s211
        $region40: #{tpu_custom_call.1} parent=35 // pred_fallthru
          _
      $region36: #{tpu_custom_call.1} parent=5 // pred_fallthru
        _
      %p213 = scmp.le.s32.totalorder 1, %s15
      %p214 = scmp.lt.s32.totalorder %s15, 3
      %p215 = pnand %p213, %p214
      %p216 = pneg %p215
      // Predicated region
      $region41: #{tpu_custom_call.1} parent=5 // pred_check
        _
      $region42: #{tpu_custom_call.1} parent=5 // pred_check_branch
        %218 = sbr.rel (%p215) target = $region44
      $region43: #{tpu_custom_call.1} parent=5 // pred_region
        %s219 = ssub.s32 %s15, 1
        %p220 = scmp.lt.s32.totalorder %s20, 1
        %s221 = scalar_select %p220, %s20, 1
        %s222 = smul.addr %s221, 8
        %s223 = scalar_lea.vmem %s0, %s222
        %p224 = pneg %p41
        %p225 = pneg %p38
        %p226 = pneg %p62
        %p227 = pneg %p59
        %p228 = pneg %p83
        %p229 = pneg %p80
        %p230 = pneg %p104
        %p231 = pneg %p101
        %p232 = pneg %p125
        %p233 = pneg %p122
        %p234 = pneg %p146
        %p235 = pneg %p143
        %p236 = pneg %p172
        %p237 = pneg %p169
        %s238 = sand.u32 %s159, 1
        %s239 = scalar_lea.sflag [#allocation3], %s238
        %s240 = sand.u32 %s159, 1
        %s241 = smul.addr %s240, 2
        %s242 = scalar_lea.vmem [#allocation2], %s241
        %p243 = scmp.lt.s32.totalorder %s20, 1
        %s244 = scalar_select %p243, %s20, 1
        %s245 = smul.addr %s244, 8
        %s246 = scalar_lea.vmem %s0, %s245
        %v248 = vld [vmem:[%s246] sm:$0xff]
        %vm249 = vcmask 261120
        %v250 = vsel %vm249, %v248, 0.0
        %251 = vadd.xlane.f32.xlu0 %v250
        %v252 = vpop.xlane.xlu0 %251
        %v253 = vrcp.pop 32.0
        %v254 = vmul.f32 %v252, %v253
        %v255 = vsub.f32 %v248, %v254
        %v256 = vmul.f32 %v255, %v255
        %v257 = vsel %vm249, %v256, 0.0
        %258 = vadd.xlane.f32.xlu0 %v257
        %v259 = vpop.xlane.xlu0 %258
        %v260 = vmul.f32 %v259, %v253
        %v261 = vadd.f32 %v260, 1e-05
        %v262 = vrsqrt.pop %v261
        %v263 = vmul.f32 %v255, %v262
        %v264 = vld [vmem:[%s1] sm:$0x1]
        %v266 = vlaneseq
        %v267 = vshrl.u32 %v266, 7
        %v268 = vsub.s32 0, %v267
        %v269 = vrot.slane %v264, %v268
        %v271 = vmul.f32 %v263, %v269
        %v272 = vpack.c.bf16 %v271, %v271
        %v273 = vld [vmem:[%s2] sm:$0xff]
        %v274 = vld [vmem:[%s2 + $0x8] sm:$0xff]
        %v275 = vld [vmem:[%s2 + $0x10] sm:$0xff]
        %v276 = vld [vmem:[%s2 + $0x18] sm:$0xff]
        %v281 = vunpack.c.l.b16 %v273
        %v282 = vunpack.c.h.b16 %v273
        %v283 = vunpack.c.l.b16 %v274
        %v284 = vunpack.c.h.b16 %v274
        %v285 = vunpack.c.l.b16 %v275
        %v286 = vunpack.c.h.b16 %v275
        %v287 = vunpack.c.l.b16 %v276
        %v288 = vunpack.c.h.b16 %v276
        %v289 = vpack.c.b16 %v283, %v281
        %v290 = vpack.c.b16 %v284, %v282
        %v291 = vpack.c.b16 %v287, %v285
        %v292 = vpack.c.b16 %v288, %v286
        %v298 = vsel %vm249, %v272, 0
        %300 = vmatprep.subr.bf16.mxu0 0
        %301 = vmatpush1.bf16.msra.mxu0 0
        %302 = vmatprep.subr.bf16.mxu0 0
        %303 = vmatpush1.bf16.msra.mxu0 0
        %304 = vmatprep.subr.bf16.mxu0 0
        %305 = vmatpush1.bf16.msra.mxu0 0
        %306 = vmatprep.subr.bf16.mxu0 0
        %307 = vmatpush1.bf16.msra.mxu0 0
        %308 = vmatprep.subr.bf16.mxu0 0
        %309 = vmatpush1.bf16.msra.mxu0 0
        %310 = vmatprep.subr.bf16.mxu0 0
        %311 = vmatpush1.bf16.msra.mxu0 0
        %312 = vmatprep.subr.bf16.mxu0 %v292
        %313 = vmatpush1.bf16.msra.mxu0 %v291
        %314 = vmatprep.subr.bf16.mxu0 %v290
        %315 = vmatpush1.bf16.msra.mxu0 %v289
        %316 = vmatprep.subr.bf16.mxu0 0
        %317 = vmatpush2.bf16.msra.mxu0 0
        %318 = vmatprep.subr.bf16.mxu0 0
        %319 = vmatpush2.bf16.msra.mxu0 0
        %320 = vmatprep.subr.bf16.mxu0 0
        %321 = vmatpush2.bf16.msra.mxu0 0
        %322 = vmatprep.subr.bf16.mxu0 0
        %323 = vmatpush2.bf16.msra.mxu0 0
        %324 = vmatprep.subr.bf16.mxu0 0
        %325 = vmatpush2.bf16.msra.mxu0 0
        %326 = vmatprep.subr.bf16.mxu0 0
        %327 = vmatpush2.bf16.msra.mxu0 0
        %328 = vmatprep.subr.bf16.mxu0 0
        %329 = vmatpush2.bf16.msra.mxu0 0
        %330 = vmatprep.subr.bf16.mxu0 0
        %331 = vmatpush2.bf16.msra.mxu0 0
        %332 = vmatprep.mubr.bf16.mxu0 0
        %333 = vmatmul.mubr.bf16.gmra.mxu0 %v298
        %v334 = vpop.f32.mrf.mxu0
        %v335 = vadd.f32 0.0, %v334
        %v336 = vpop.f32.mrf.mxu0
        %v337 = vadd.f32 0.0, %v336
        %v338 = vpop.f32.mrf.mxu0
        %v339 = vpop.f32.mrf.mxu0
        %340 = vdwg.mxu0
        %342 = vrot.lane.b32.xlu0 %v335, 112
        %v343 = vpop.permute.xlu0 %342
        %345 = vrot.lane.b32.xlu0 %v335, 96
        %v346 = vpop.permute.xlu0 %345
        %348 = vrot.lane.b32.xlu0 %v335, 80
        %v349 = vpop.permute.xlu0 %348
        %351 = vrot.lane.b32.xlu0 %v335, 64
        %v352 = vpop.permute.xlu0 %351
        %354 = vrot.lane.b32.xlu0 %v335, 48
        %v355 = vpop.permute.xlu0 %354
        %357 = vrot.lane.b32.xlu0 %v335, 32
        %v358 = vpop.permute.xlu0 %357
        %360 = vrot.lane.b32.xlu0 %v335, 16
        %v361 = vpop.permute.xlu0 %360
        %364 = vrot.lane.b32.xlu0 %v337, 112
        %v365 = vpop.permute.xlu0 %364
        %367 = vrot.lane.b32.xlu0 %v337, 96
        %v368 = vpop.permute.xlu0 %367
        %370 = vrot.lane.b32.xlu0 %v337, 80
        %v371 = vpop.permute.xlu0 %370
        %v373 = vld [vmem:[%s4] sm:$0x1]
        %v374 = vld [vmem:[%s4 + $0x1] sm:$0x1]
        %v375 = vld [vmem:[%s4 + $0x2] sm:$0x1]
        %v376 = vld [vmem:[%s4 + $0x3] sm:$0x1]
        %v377 = vmul.f32 %v335, %v335
        %v378 = vmul.f32 %v343, %v343
        %v379 = vmul.f32 %v346, %v346
        %v380 = vmul.f32 %v349, %v349
        %vm381 = vcmask 130048
        %v382 = vsel %vm381, %v377, 0.0
        %383 = vadd.xlane.f32.xlu0 %v382
        %v384 = vpop.xlane.xlu0 %383
        %v385 = vsel %vm381, %v378, 0.0
        %386 = vadd.xlane.f32.xlu0 %v385
        %v387 = vpop.xlane.xlu0 %386
        %v388 = vsel %vm381, %v379, 0.0
        %389 = vadd.xlane.f32.xlu0 %v388
        %v390 = vpop.xlane.xlu0 %389
        %v391 = vsel %vm381, %v380, 0.0
        %392 = vadd.xlane.f32.xlu0 %v391
        %v393 = vpop.xlane.xlu0 %392
        %v394 = vmax.f32 %v384, 1e-24
        %v395 = vmax.f32 %v387, 1e-24
        %v396 = vmax.f32 %v390, 1e-24
        %v397 = vmax.f32 %v393, 1e-24
        %v398 = vrsqrt.pop %v394
        %v399 = vrsqrt.pop %v395
        %v400 = vrsqrt.pop %v396
        %v401 = vrsqrt.pop %v397
        %v402 = vmul.f32 %v335, %v398
        %v403 = vmul.f32 %v343, %v399
        %v404 = vmul.f32 %v346, %v400
        %v405 = vmul.f32 %v349, %v401
        %v410 = vlaneseq
        %v411 = vshrl.u32 %v410, 7
        %v412 = vsub.s32 0, %v411
        %v413 = vrot.slane %v373, %v412
        %v414 = vlaneseq
        %v415 = vshrl.u32 %v414, 7
        %v416 = vsub.s32 0, %v415
        %v417 = vrot.slane %v374, %v416
        %v418 = vlaneseq
        %v419 = vshrl.u32 %v418, 7
        %v420 = vsub.s32 0, %v419
        %v421 = vrot.slane %v375, %v420
        %v422 = vlaneseq
        %v423 = vshrl.u32 %v422, 7
        %v424 = vsub.s32 0, %v423
        %v425 = vrot.slane %v376, %v424
        %v430 = vmul.f32 %v402, %v413
        %v431 = vmul.f32 %v403, %v417
        %v432 = vmul.f32 %v404, %v421
        %v433 = vmul.f32 %v405, %v425
        %v434 = vld [vmem:[%s5] sm:$0x1]
        %v435 = vld [vmem:[%s5 + $0x1] sm:$0x1]
        %v436 = vld [vmem:[%s5 + $0x2] sm:$0x1]
        %v437 = vld [vmem:[%s5 + $0x3] sm:$0x1]
        %v438 = vmul.f32 %v352, %v352
        %v439 = vmul.f32 %v355, %v355
        %v440 = vmul.f32 %v358, %v358
        %v441 = vmul.f32 %v361, %v361
        %v442 = vsel %vm381, %v438, 0.0
        %443 = vadd.xlane.f32.xlu0 %v442
        %v444 = vpop.xlane.xlu0 %443
        %v445 = vsel %vm381, %v439, 0.0
        %446 = vadd.xlane.f32.xlu0 %v445
        %v447 = vpop.xlane.xlu0 %446
        %v448 = vsel %vm381, %v440, 0.0
        %449 = vadd.xlane.f32.xlu0 %v448
        %v450 = vpop.xlane.xlu0 %449
        %v451 = vsel %vm381, %v441, 0.0
        %452 = vadd.xlane.f32.xlu0 %v451
        %v453 = vpop.xlane.xlu0 %452
        %v454 = vmax.f32 %v444, 1e-24
        %v455 = vmax.f32 %v447, 1e-24
        %v456 = vmax.f32 %v450, 1e-24
        %v457 = vmax.f32 %v453, 1e-24
        %v458 = vrsqrt.pop %v454
        %v459 = vrsqrt.pop %v455
        %v460 = vrsqrt.pop %v456
        %v461 = vrsqrt.pop %v457
        %v462 = vmul.f32 %v352, %v458
        %v463 = vmul.f32 %v355, %v459
        %v464 = vmul.f32 %v358, %v460
        %v465 = vmul.f32 %v361, %v461
        %v470 = vlaneseq
        %v471 = vshrl.u32 %v470, 7
        %v472 = vsub.s32 0, %v471
        %v473 = vrot.slane %v434, %v472
        %v474 = vlaneseq
        %v475 = vshrl.u32 %v474, 7
        %v476 = vsub.s32 0, %v475
        %v477 = vrot.slane %v435, %v476
        %v478 = vlaneseq
        %v479 = vshrl.u32 %v478, 7
        %v480 = vsub.s32 0, %v479
        %v481 = vrot.slane %v436, %v480
        %v482 = vlaneseq
        %v483 = vshrl.u32 %v482, 7
        %v484 = vsub.s32 0, %v483
        %v485 = vrot.slane %v437, %v484
        %v490 = vmul.f32 %v462, %v473
        %v491 = vmul.f32 %v463, %v477
        %v492 = vmul.f32 %v464, %v481
        %v493 = vmul.f32 %v465, %v485
        %v494 = vpack.c.bf16 %v430, %v430
        %v495 = vpack.c.bf16 %v431, %v431
        %v496 = vpack.c.bf16 %v432, %v432
        %v497 = vpack.c.bf16 %v433, %v433
        %v498 = vpack.c.bf16 %v490, %v490
        %v499 = vpack.c.bf16 %v491, %v491
        %v500 = vpack.c.bf16 %v492, %v492
        %v501 = vpack.c.bf16 %v493, %v493
        %v503 = vsel %vm381, %v494, 0
        %v506 = vsel %vm381, %v498, 0
        %508 = vmatprep.subr.bf16.mxu0 0
        %509 = vmatpush1.bf16.xpose.msra.mxu0 0
        %510 = vmatprep.subr.bf16.mxu0 0
        %511 = vmatpush1.bf16.xpose.msra.mxu0 0
        %512 = vmatprep.subr.bf16.mxu0 0
        %513 = vmatpush1.bf16.xpose.msra.mxu0 0
        %514 = vmatprep.subr.bf16.mxu0 0
        %515 = vmatpush1.bf16.xpose.msra.mxu0 0
        %516 = vmatprep.subr.bf16.mxu0 0
        %517 = vmatpush1.bf16.xpose.msra.mxu0 0
        %518 = vmatprep.subr.bf16.mxu0 0
        %519 = vmatpush1.bf16.xpose.msra.mxu0 0
        %520 = vmatprep.subr.bf16.mxu0 0
        %521 = vmatpush1.bf16.xpose.msra.mxu0 0
        %522 = vmatprep.subr.bf16.mxu0 0
        %523 = vmatpush1.bf16.xpose.msra.mxu0 %v506
        %524 = vmatprep.subr.bf16.mxu0 0
        %525 = vmatpush2.bf16.xpose.msra.mxu0 0
        %526 = vmatprep.subr.bf16.mxu0 0
        %527 = vmatpush2.bf16.xpose.msra.mxu0 0
        %528 = vmatprep.subr.bf16.mxu0 0
        %529 = vmatpush2.bf16.xpose.msra.mxu0 0
        %530 = vmatprep.subr.bf16.mxu0 0
        %531 = vmatpush2.bf16.xpose.msra.mxu0 0
        %532 = vmatprep.subr.bf16.mxu0 0
        %533 = vmatpush2.bf16.xpose.msra.mxu0 0
        %534 = vmatprep.subr.bf16.mxu0 0
        %535 = vmatpush2.bf16.xpose.msra.mxu0 0
        %536 = vmatprep.subr.bf16.mxu0 0
        %537 = vmatpush2.bf16.xpose.msra.mxu0 0
        %538 = vmatprep.subr.bf16.mxu0 0
        %539 = vmatpush2.bf16.xpose.msra.mxu0 0
        %540 = vmatprep.mubr.bf16.mxu0 0
        %541 = vmatmul.mubr.bf16.gmra.mxu0 %v503
        %v542 = vpop.f32.mrf.mxu0
        %v543 = vadd.f32 0.0, %v542
        %v544 = vpop.f32.mrf.mxu0
        %v545 = vpop.f32.mrf.mxu0
        %v546 = vpop.f32.mrf.mxu0
        %547 = vdwg.mxu0
        %v549 = vsel %vm381, %v495, 0
        %v552 = vsel %vm381, %v499, 0
        %554 = vmatprep.subr.bf16.mxu0 0
        %555 = vmatpush1.bf16.xpose.msra.mxu0 0
        %556 = vmatprep.subr.bf16.mxu0 0
        %557 = vmatpush1.bf16.xpose.msra.mxu0 0
        %558 = vmatprep.subr.bf16.mxu0 0
        %559 = vmatpush1.bf16.xpose.msra.mxu0 0
        %560 = vmatprep.subr.bf16.mxu0 0
        %561 = vmatpush1.bf16.xpose.msra.mxu0 0
        %562 = vmatprep.subr.bf16.mxu0 0
        %563 = vmatpush1.bf16.xpose.msra.mxu0 0
        %564 = vmatprep.subr.bf16.mxu0 0
        %565 = vmatpush1.bf16.xpose.msra.mxu0 0
        %566 = vmatprep.subr.bf16.mxu0 0
        %567 = vmatpush1.bf16.xpose.msra.mxu0 0
        %568 = vmatprep.subr.bf16.mxu0 0
        %569 = vmatpush1.bf16.xpose.msra.mxu0 %v552
        %570 = vmatprep.subr.bf16.mxu0 0
        %571 = vmatpush2.bf16.xpose.msra.mxu0 0
        %572 = vmatprep.subr.bf16.mxu0 0
        %573 = vmatpush2.bf16.xpose.msra.mxu0 0
        %574 = vmatprep.subr.bf16.mxu0 0
        %575 = vmatpush2.bf16.xpose.msra.mxu0 0
        %576 = vmatprep.subr.bf16.mxu0 0
        %577 = vmatpush2.bf16.xpose.msra.mxu0 0
        %578 = vmatprep.subr.bf16.mxu0 0
        %579 = vmatpush2.bf16.xpose.msra.mxu0 0
        %580 = vmatprep.subr.bf16.mxu0 0
        %581 = vmatpush2.bf16.xpose.msra.mxu0 0
        %582 = vmatprep.subr.bf16.mxu0 0
        %583 = vmatpush2.bf16.xpose.msra.mxu0 0
        %584 = vmatprep.subr.bf16.mxu0 0
        %585 = vmatpush2.bf16.xpose.msra.mxu0 0
        %586 = vmatprep.mubr.bf16.mxu0 0
        %587 = vmatmul.mubr.bf16.gmra.mxu0 %v549
        %v588 = vpop.f32.mrf.mxu0
        %v589 = vadd.f32 0.0, %v588
        %v590 = vpop.f32.mrf.mxu0
        %v591 = vpop.f32.mrf.mxu0
        %v592 = vpop.f32.mrf.mxu0
        %593 = vdwg.mxu0
        %v595 = vsel %vm381, %v496, 0
        %v598 = vsel %vm381, %v500, 0
        %600 = vmatprep.subr.bf16.mxu0 0
        %601 = vmatpush1.bf16.xpose.msra.mxu0 0
        %602 = vmatprep.subr.bf16.mxu0 0
        %603 = vmatpush1.bf16.xpose.msra.mxu0 0
        %604 = vmatprep.subr.bf16.mxu0 0
        %605 = vmatpush1.bf16.xpose.msra.mxu0 0
        %606 = vmatprep.subr.bf16.mxu0 0
        %607 = vmatpush1.bf16.xpose.msra.mxu0 0
        %608 = vmatprep.subr.bf16.mxu0 0
        %609 = vmatpush1.bf16.xpose.msra.mxu0 0
        %610 = vmatprep.subr.bf16.mxu0 0
        %611 = vmatpush1.bf16.xpose.msra.mxu0 0
        %612 = vmatprep.subr.bf16.mxu0 0
        %613 = vmatpush1.bf16.xpose.msra.mxu0 0
        %614 = vmatprep.subr.bf16.mxu0 0
        %615 = vmatpush1.bf16.xpose.msra.mxu0 %v598
        %616 = vmatprep.subr.bf16.mxu0 0
        %617 = vmatpush2.bf16.xpose.msra.mxu0 0
        %618 = vmatprep.subr.bf16.mxu0 0
        %619 = vmatpush2.bf16.xpose.msra.mxu0 0
        %620 = vmatprep.subr.bf16.mxu0 0
        %621 = vmatpush2.bf16.xpose.msra.mxu0 0
        %622 = vmatprep.subr.bf16.mxu0 0
        %623 = vmatpush2.bf16.xpose.msra.mxu0 0
        %624 = vmatprep.subr.bf16.mxu0 0
        %625 = vmatpush2.bf16.xpose.msra.mxu0 0
        %626 = vmatprep.subr.bf16.mxu0 0
        %627 = vmatpush2.bf16.xpose.msra.mxu0 0
        %628 = vmatprep.subr.bf16.mxu0 0
        %629 = vmatpush2.bf16.xpose.msra.mxu0 0
        %630 = vmatprep.subr.bf16.mxu0 0
        %631 = vmatpush2.bf16.xpose.msra.mxu0 0
        %632 = vmatprep.mubr.bf16.mxu0 0
        %633 = vmatmul.mubr.bf16.gmra.mxu0 %v595
        %v634 = vpop.f32.mrf.mxu0
        %v635 = vadd.f32 0.0, %v634
        %v636 = vpop.f32.mrf.mxu0
        %v637 = vpop.f32.mrf.mxu0
        %v638 = vpop.f32.mrf.mxu0
        %639 = vdwg.mxu0
        %v641 = vsel %vm381, %v497, 0
        %v644 = vsel %vm381, %v501, 0
        %646 = vmatprep.subr.bf16.mxu0 0
        %647 = vmatpush1.bf16.xpose.msra.mxu0 0
        %648 = vmatprep.subr.bf16.mxu0 0
        %649 = vmatpush1.bf16.xpose.msra.mxu0 0
        %650 = vmatprep.subr.bf16.mxu0 0
        %651 = vmatpush1.bf16.xpose.msra.mxu0 0
        %652 = vmatprep.subr.bf16.mxu0 0
        %653 = vmatpush1.bf16.xpose.msra.mxu0 0
        %654 = vmatprep.subr.bf16.mxu0 0
        %655 = vmatpush1.bf16.xpose.msra.mxu0 0
        %656 = vmatprep.subr.bf16.mxu0 0
        %657 = vmatpush1.bf16.xpose.msra.mxu0 0
        %658 = vmatprep.subr.bf16.mxu0 0
        %659 = vmatpush1.bf16.xpose.msra.mxu0 0
        %660 = vmatprep.subr.bf16.mxu0 0
        %661 = vmatpush1.bf16.xpose.msra.mxu0 %v644
        %662 = vmatprep.subr.bf16.mxu0 0
        %663 = vmatpush2.bf16.xpose.msra.mxu0 0
        %664 = vmatprep.subr.bf16.mxu0 0
        %665 = vmatpush2.bf16.xpose.msra.mxu0 0
        %666 = vmatprep.subr.bf16.mxu0 0
        %667 = vmatpush2.bf16.xpose.msra.mxu0 0
        %668 = vmatprep.subr.bf16.mxu0 0
        %669 = vmatpush2.bf16.xpose.msra.mxu0 0
        %670 = vmatprep.subr.bf16.mxu0 0
        %671 = vmatpush2.bf16.xpose.msra.mxu0 0
        %672 = vmatprep.subr.bf16.mxu0 0
        %673 = vmatpush2.bf16.xpose.msra.mxu0 0
        %674 = vmatprep.subr.bf16.mxu0 0
        %675 = vmatpush2.bf16.xpose.msra.mxu0 0
        %676 = vmatprep.subr.bf16.mxu0 0
        %677 = vmatpush2.bf16.xpose.msra.mxu0 0
        %678 = vmatprep.mubr.bf16.mxu0 0
        %679 = vmatmul.mubr.bf16.gmra.mxu0 %v641
        %v680 = vpop.f32.mrf.mxu0
        %v681 = vadd.f32 0.0, %v680
        %v682 = vpop.f32.mrf.mxu0
        %v683 = vpop.f32.mrf.mxu0
        %v684 = vpop.f32.mrf.mxu0
        %685 = vdwg.mxu0
        %vm686 = vcmask 64512
        %v687 = vsel %vm686, %v543, -inf
        %688 = vmax.xlane.f32.xlu0 %v687
        %v689 = vpop.xlane.xlu0 %688
        %v690 = vsel %vm686, %v589, -inf
        %691 = vmax.xlane.f32.xlu0 %v690
        %v692 = vpop.xlane.xlu0 %691
        %v693 = vsel %vm686, %v635, -inf
        %694 = vmax.xlane.f32.xlu0 %v693
        %v695 = vpop.xlane.xlu0 %694
        %v696 = vsel %vm686, %v681, -inf
        %697 = vmax.xlane.f32.xlu0 %v696
        %v698 = vpop.xlane.xlu0 %697
        %v699 = vsub.f32 %v543, %v689
        %v700 = vsub.f32 %v589, %v692
        %v701 = vsub.f32 %v635, %v695
        %v702 = vsub.f32 %v681, %v698
        %v703 = vmul.f32 %v699, 1.442695
        %v704 = vpow.pop %v703
        %v705 = vmul.f32 %v700, 1.442695
        %v706 = vpow.pop %v705
        %v707 = vmul.f32 %v701, 1.442695
        %v708 = vpow.pop %v707
        %v709 = vmul.f32 %v702, 1.442695
        %v710 = vpow.pop %v709
        %v711 = vsel %vm686, %v704, 0.0
        %712 = vadd.xlane.f32.xlu0 %v711
        %v713 = vpop.xlane.xlu0 %712
        %v714 = vsel %vm686, %v706, 0.0
        %715 = vadd.xlane.f32.xlu0 %v714
        %v716 = vpop.xlane.xlu0 %715
        %v717 = vsel %vm686, %v708, 0.0
        %718 = vadd.xlane.f32.xlu0 %v717
        %v719 = vpop.xlane.xlu0 %718
        %v720 = vsel %vm686, %v710, 0.0
        %721 = vadd.xlane.f32.xlu0 %v720
        %v722 = vpop.xlane.xlu0 %721
        %v723 = vrcp.pop %v713
        %v724 = vrcp.pop %v716
        %v725 = vrcp.pop %v719
        %v726 = vrcp.pop %v722
        %v727 = vmul.f32 %v704, %v723
        %v728 = vmul.f32 %v706, %v724
        %v729 = vmul.f32 %v708, %v725
        %v730 = vmul.f32 %v710, %v726
        %v731 = vpack.c.bf16 %v727, %v727
        %v732 = vpack.c.bf16 %v728, %v728
        %v733 = vpack.c.bf16 %v729, %v729
        %v734 = vpack.c.bf16 %v730, %v730
        %v735 = vpack.c.bf16 %v337, %v337
        %v736 = vpack.c.bf16 %v365, %v365
        %v737 = vpack.c.bf16 %v368, %v368
        %v738 = vpack.c.bf16 %v371, %v371
        %v740 = vsel %vm686, %v731, 0
        %vm742 = vcmask 1043456
        %v744 = vsel %vm742, %v735, 0
        %746 = vmatprep.subr.bf16.mxu0 0
        %747 = vmatpush1.bf16.msra.mxu0 0
        %748 = vmatprep.subr.bf16.mxu0 0
        %749 = vmatpush1.bf16.msra.mxu0 0
        %750 = vmatprep.subr.bf16.mxu0 0
        %751 = vmatpush1.bf16.msra.mxu0 0
        %752 = vmatprep.subr.bf16.mxu0 0
        %753 = vmatpush1.bf16.msra.mxu0 0
        %754 = vmatprep.subr.bf16.mxu0 0
        %755 = vmatpush1.bf16.msra.mxu0 0
        %756 = vmatprep.subr.bf16.mxu0 0
        %757 = vmatpush1.bf16.msra.mxu0 0
        %758 = vmatprep.subr.bf16.mxu0 0
        %759 = vmatpush1.bf16.msra.mxu0 0
        %760 = vmatprep.subr.bf16.mxu0 0
        %761 = vmatpush1.bf16.msra.mxu0 %v744
        %762 = vmatprep.subr.bf16.mxu0 0
        %763 = vmatpush2.bf16.msra.mxu0 0
        %764 = vmatprep.subr.bf16.mxu0 0
        %765 = vmatpush2.bf16.msra.mxu0 0
        %766 = vmatprep.subr.bf16.mxu0 0
        %767 = vmatpush2.bf16.msra.mxu0 0
        %768 = vmatprep.subr.bf16.mxu0 0
        %769 = vmatpush2.bf16.msra.mxu0 0
        %770 = vmatprep.subr.bf16.mxu0 0
        %771 = vmatpush2.bf16.msra.mxu0 0
        %772 = vmatprep.subr.bf16.mxu0 0
        %773 = vmatpush2.bf16.msra.mxu0 0
        %774 = vmatprep.subr.bf16.mxu0 0
        %775 = vmatpush2.bf16.msra.mxu0 0
        %776 = vmatprep.subr.bf16.mxu0 0
        %777 = vmatpush2.bf16.msra.mxu0 0
        %778 = vmatprep.mubr.bf16.mxu0 0
        %779 = vmatmul.mubr.bf16.gmra.mxu0 %v740
        %v780 = vpop.f32.mrf.mxu0
        %v781 = vadd.f32 0.0, %v780
        %v782 = vpop.f32.mrf.mxu0
        %v783 = vpop.f32.mrf.mxu0
        %v784 = vpop.f32.mrf.mxu0
        %785 = vdwg.mxu0
        %v787 = vsel %vm686, %v732, 0
        %v790 = vsel %vm742, %v736, 0
        %792 = vmatprep.subr.bf16.mxu0 0
        %793 = vmatpush1.bf16.msra.mxu0 0
        %794 = vmatprep.subr.bf16.mxu0 0
        %795 = vmatpush1.bf16.msra.mxu0 0
        %796 = vmatprep.subr.bf16.mxu0 0
        %797 = vmatpush1.bf16.msra.mxu0 0
        %798 = vmatprep.subr.bf16.mxu0 0
        %799 = vmatpush1.bf16.msra.mxu0 0
        %800 = vmatprep.subr.bf16.mxu0 0
        %801 = vmatpush1.bf16.msra.mxu0 0
        %802 = vmatprep.subr.bf16.mxu0 0
        %803 = vmatpush1.bf16.msra.mxu0 0
        %804 = vmatprep.subr.bf16.mxu0 0
        %805 = vmatpush1.bf16.msra.mxu0 0
        %806 = vmatprep.subr.bf16.mxu0 0
        %807 = vmatpush1.bf16.msra.mxu0 %v790
        %808 = vmatprep.subr.bf16.mxu0 0
        %809 = vmatpush2.bf16.msra.mxu0 0
        %810 = vmatprep.subr.bf16.mxu0 0
        %811 = vmatpush2.bf16.msra.mxu0 0
        %812 = vmatprep.subr.bf16.mxu0 0
        %813 = vmatpush2.bf16.msra.mxu0 0
        %814 = vmatprep.subr.bf16.mxu0 0
        %815 = vmatpush2.bf16.msra.mxu0 0
        %816 = vmatprep.subr.bf16.mxu0 0
        %817 = vmatpush2.bf16.msra.mxu0 0
        %818 = vmatprep.subr.bf16.mxu0 0
        %819 = vmatpush2.bf16.msra.mxu0 0
        %820 = vmatprep.subr.bf16.mxu0 0
        %821 = vmatpush2.bf16.msra.mxu0 0
        %822 = vmatprep.subr.bf16.mxu0 0
        %823 = vmatpush2.bf16.msra.mxu0 0
        %824 = vmatprep.mubr.bf16.mxu0 0
        %825 = vmatmul.mubr.bf16.gmra.mxu0 %v787
        %v826 = vpop.f32.mrf.mxu0
        %v827 = vadd.f32 0.0, %v826
        %v828 = vpop.f32.mrf.mxu0
        %v829 = vpop.f32.mrf.mxu0
        %v830 = vpop.f32.mrf.mxu0
        %831 = vdwg.mxu0
        %v833 = vsel %vm686, %v733, 0
        %v836 = vsel %vm742, %v737, 0
        %838 = vmatprep.subr.bf16.mxu0 0
        %839 = vmatpush1.bf16.msra.mxu0 0
        %840 = vmatprep.subr.bf16.mxu0 0
        %841 = vmatpush1.bf16.msra.mxu0 0
        %842 = vmatprep.subr.bf16.mxu0 0
        %843 = vmatpush1.bf16.msra.mxu0 0
        %844 = vmatprep.subr.bf16.mxu0 0
        %845 = vmatpush1.bf16.msra.mxu0 0
        %846 = vmatprep.subr.bf16.mxu0 0
        %847 = vmatpush1.bf16.msra.mxu0 0
        %848 = vmatprep.subr.bf16.mxu0 0
        %849 = vmatpush1.bf16.msra.mxu0 0
        %850 = vmatprep.subr.bf16.mxu0 0
        %851 = vmatpush1.bf16.msra.mxu0 0
        %852 = vmatprep.subr.bf16.mxu0 0
        %853 = vmatpush1.bf16.msra.mxu0 %v836
        %854 = vmatprep.subr.bf16.mxu0 0
        %855 = vmatpush2.bf16.msra.mxu0 0
        %856 = vmatprep.subr.bf16.mxu0 0
        %857 = vmatpush2.bf16.msra.mxu0 0
        %858 = vmatprep.subr.bf16.mxu0 0
        %859 = vmatpush2.bf16.msra.mxu0 0
        %860 = vmatprep.subr.bf16.mxu0 0
        %861 = vmatpush2.bf16.msra.mxu0 0
        %862 = vmatprep.subr.bf16.mxu0 0
        %863 = vmatpush2.bf16.msra.mxu0 0
        %864 = vmatprep.subr.bf16.mxu0 0
        %865 = vmatpush2.bf16.msra.mxu0 0
        %866 = vmatprep.subr.bf16.mxu0 0
        %867 = vmatpush2.bf16.msra.mxu0 0
        %868 = vmatprep.subr.bf16.mxu0 0
        %869 = vmatpush2.bf16.msra.mxu0 0
        %870 = vmatprep.mubr.bf16.mxu0 0
        %871 = vmatmul.mubr.bf16.gmra.mxu0 %v833
        %v872 = vpop.f32.mrf.mxu0
        %v873 = vadd.f32 0.0, %v872
        %v874 = vpop.f32.mrf.mxu0
        %v875 = vpop.f32.mrf.mxu0
        %v876 = vpop.f32.mrf.mxu0
        %877 = vdwg.mxu0
        %v879 = vsel %vm686, %v734, 0
        %v882 = vsel %vm742, %v738, 0
        %884 = vmatprep.subr.bf16.mxu0 0
        %885 = vmatpush1.bf16.msra.mxu0 0
        %886 = vmatprep.subr.bf16.mxu0 0
        %887 = vmatpush1.bf16.msra.mxu0 0
        %888 = vmatprep.subr.bf16.mxu0 0
        %889 = vmatpush1.bf16.msra.mxu0 0
        %890 = vmatprep.subr.bf16.mxu0 0
        %891 = vmatpush1.bf16.msra.mxu0 0
        %892 = vmatprep.subr.bf16.mxu0 0
        %893 = vmatpush1.bf16.msra.mxu0 0
        %894 = vmatprep.subr.bf16.mxu0 0
        %895 = vmatpush1.bf16.msra.mxu0 0
        %896 = vmatprep.subr.bf16.mxu0 0
        %897 = vmatpush1.bf16.msra.mxu0 0
        %898 = vmatprep.subr.bf16.mxu0 0
        %899 = vmatpush1.bf16.msra.mxu0 %v882
        %900 = vmatprep.subr.bf16.mxu0 0
        %901 = vmatpush2.bf16.msra.mxu0 0
        %902 = vmatprep.subr.bf16.mxu0 0
        %903 = vmatpush2.bf16.msra.mxu0 0
        %904 = vmatprep.subr.bf16.mxu0 0
        %905 = vmatpush2.bf16.msra.mxu0 0
        %906 = vmatprep.subr.bf16.mxu0 0
        %907 = vmatpush2.bf16.msra.mxu0 0
        %908 = vmatprep.subr.bf16.mxu0 0
        %909 = vmatpush2.bf16.msra.mxu0 0
        %910 = vmatprep.subr.bf16.mxu0 0
        %911 = vmatpush2.bf16.msra.mxu0 0
        %912 = vmatprep.subr.bf16.mxu0 0
        %913 = vmatpush2.bf16.msra.mxu0 0
        %914 = vmatprep.subr.bf16.mxu0 0
        %915 = vmatpush2.bf16.msra.mxu0 0
        %916 = vmatprep.mubr.bf16.mxu0 0
        %917 = vmatmul.mubr.bf16.gmra.mxu0 %v879
        %v918 = vpop.f32.mrf.mxu0
        %v919 = vadd.f32 0.0, %v918
        %v920 = vpop.f32.mrf.mxu0
        %v921 = vpop.f32.mrf.mxu0
        %v922 = vpop.f32.mrf.mxu0
        %923 = vdwg.mxu0
        %925 = vrot.lane.b32.xlu0 %v827, 16
        %v926 = vpop.permute.xlu0 %925
        %929 = vrot.lane.b32.xlu0 %v873, 32
        %v930 = vpop.permute.xlu0 %929
        %933 = vrot.lane.b32.xlu0 %v919, 48
        %v934 = vpop.permute.xlu0 %933
        %v936 = vsel %vm381, %v781, %v926
        %v937 = vsel %vm249, %v936, %v930
        %vm938 = vcmask 392192
        %v939 = vsel %vm938, %v937, %v934
        %v940 = vpack.c.bf16 %v939, %v939
        %v941 = vld [vmem:[%s3] sm:$0xf]
        %v942 = vld [vmem:[%s3 + $0x4] sm:$0xf]
        %v943 = vld [vmem:[%s3 + $0x8] sm:$0xf]
        %v944 = vld [vmem:[%s3 + $0xc] sm:$0xf]
        %v945 = vld [vmem:[%s3 + $0x10] sm:$0xf]
        %v946 = vld [vmem:[%s3 + $0x14] sm:$0xf]
        %v947 = vld [vmem:[%s3 + $0x18] sm:$0xf]
        %v948 = vld [vmem:[%s3 + $0x1c] sm:$0xf]
        %v957 = vunpack.c.l.b16 %v941
        %v958 = vunpack.c.l.b16 %v942
        %v959 = vunpack.c.l.b16 %v943
        %v960 = vunpack.c.l.b16 %v944
        %v961 = vunpack.c.l.b16 %v945
        %v962 = vunpack.c.l.b16 %v946
        %v963 = vunpack.c.l.b16 %v947
        %v964 = vunpack.c.l.b16 %v948
        %v965 = vpack.c.b16 %v958, %v957
        %v966 = vpack.c.b16 %v960, %v959
        %v967 = vpack.c.b16 %v962, %v961
        %v968 = vpack.c.b16 %v964, %v963
        %vm973 = vcmask 523264
        %v975 = vsel %vm973, %v940, 0
        %977 = vmatprep.subr.bf16.mxu0 0
        %978 = vmatpush1.bf16.msra.mxu0 0
        %979 = vmatprep.subr.bf16.mxu0 0
        %980 = vmatpush1.bf16.msra.mxu0 0
        %981 = vmatprep.subr.bf16.mxu0 0
        %982 = vmatpush1.bf16.msra.mxu0 0
        %983 = vmatprep.subr.bf16.mxu0 0
        %984 = vmatpush1.bf16.msra.mxu0 0
        %985 = vmatprep.subr.bf16.mxu0 0
        %986 = vmatpush1.bf16.msra.mxu0 %v968
        %987 = vmatprep.subr.bf16.mxu0 0
        %988 = vmatpush1.bf16.msra.mxu0 %v967
        %989 = vmatprep.subr.bf16.mxu0 0
        %990 = vmatpush1.bf16.msra.mxu0 %v966
        %991 = vmatprep.subr.bf16.mxu0 0
        %992 = vmatpush1.bf16.msra.mxu0 %v965
        %993 = vmatprep.subr.bf16.mxu0 0
        %994 = vmatpush2.bf16.msra.mxu0 0
        %995 = vmatprep.subr.bf16.mxu0 0
        %996 = vmatpush2.bf16.msra.mxu0 0
        %997 = vmatprep.subr.bf16.mxu0 0
        %998 = vmatpush2.bf16.msra.mxu0 0
        %999 = vmatprep.subr.bf16.mxu0 0
        %1000 = vmatpush2.bf16.msra.mxu0 0
        %1001 = vmatprep.subr.bf16.mxu0 0
        %1002 = vmatpush2.bf16.msra.mxu0 0
        %1003 = vmatprep.subr.bf16.mxu0 0
        %1004 = vmatpush2.bf16.msra.mxu0 0
        %1005 = vmatprep.subr.bf16.mxu0 0
        %1006 = vmatpush2.bf16.msra.mxu0 0
        %1007 = vmatprep.subr.bf16.mxu0 0
        %1008 = vmatpush2.bf16.msra.mxu0 0
        %1009 = vmatprep.mubr.bf16.mxu0 0
        %1010 = vmatmul.mubr.bf16.gmra.mxu0 %v975
        %v1011 = vpop.f32.mrf.mxu0
        %v1012 = vadd.f32 0.0, %v1011
        %v1013 = vpop.f32.mrf.mxu0
        %v1014 = vpop.f32.mrf.mxu0
        %v1015 = vpop.f32.mrf.mxu0
        %1016 = vdwg.mxu0
        %v1018 = vrot.slane %v1012, 1
        %1019 = vrot.lane.b32.xlu0 %v1018, 32
        %v1020 = vpop.permute.xlu0 %1019
        %v1022 = vrot.slane %v1012, 2
        %1023 = vrot.lane.b32.xlu0 %v1022, 64
        %v1024 = vpop.permute.xlu0 %1023
        %v1026 = vrot.slane %v1012, 3
        %1027 = vrot.lane.b32.xlu0 %v1026, 96
        %v1028 = vpop.permute.xlu0 %1027
        %v1030 = vrot.slane %v1012, 4
        %v1032 = vrot.slane %v1012, 5
        %1033 = vrot.lane.b32.xlu0 %v1032, 32
        %v1034 = vpop.permute.xlu0 %1033
        %v1036 = vrot.slane %v1012, 6
        %1037 = vrot.lane.b32.xlu0 %v1036, 64
        %v1038 = vpop.permute.xlu0 %1037
        %v1040 = vrot.slane %v1012, 7
        %1041 = vrot.lane.b32.xlu0 %v1040, 96
        %v1042 = vpop.permute.xlu0 %1041
        %v1044 = vsel %vm249, %v1012, %v1020
        %v1045 = vsel %vm973, %v1044, %v1024
        %vm1046 = vcmask 785408
        %v1047 = vsel %vm1046, %v1045, %v1028
        %v1048 = vsel %vm249, %v1030, %v1034
        %v1049 = vsel %vm973, %v1048, %v1038
        %v1050 = vsel %vm1046, %v1049, %v1042
        %v1053 = vcombine.low %v1047, %v1050
        %v1055 = vunpack.c.l.s4 1966171168
        %v1056 = vunpack.c.0.s8 %v1055
        %v1057 = vlaneseq
        %v1058 = vshrl.u32 %v1057, 7
        %v1059 = vsub.s32 %v1056, %v1058
        %v1060 = vrot.slane %v1053, %v1059
        %v1062 = vunpack.c.l.s4 1966171168
        %v1063 = vunpack.c.0.s8 %v1062
        %v1064 = vlaneseq
        %v1065 = vshrl.u32 %v1064, 7
        %v1066 = vsub.s32 %v1063, %v1065
        %v1067 = vrot.slane %v1060, %v1066
        %v1069 = vlaneseq
        %vm1070 = vcmp.ge.s32.totalorder %v1069, 0
        %vm1071 = vcmp.lt.s32.totalorder %v1069, 256
        %vm1072 = vmand %vm1070, %vm1071
        %1073 = vst.msk [vmem:[%s242] sm:$0x3] %vm1072, %v1067
        %s1074 = sand.u32 %s159, 1
        %s1075 = scalar_lea.sflag [#allocation3], %s1074
        %s1076 = sand.u32 %s159, 1
        %s1077 = smul.addr %s1076, 2
        %s1078 = scalar_lea.vmem [#allocation2], %s1077
        // Predicated region
        $region45: #{tpu_custom_call.1} parent=43 // pred_check
          %p1079 = pneg %p169
        $region46: #{tpu_custom_call.1} parent=43 // pred_check_branch
          %1081 = sbr.rel (%p1079) target = $region48
        $region47: #{tpu_custom_call.1} parent=43 // pred_region
          %s1083 = ssub.s32 32, 32
          %1084 = vsyncadd %s1075, %s1083
          %s1085 = smul.addr %s20, 2
          %s1086 = smul.addr %s1085, 16
          %s1087 = scalar_lea.hbm %s6, %s1086
          %s1089 = sshll.u32 %s1078, 4
          %s1090 = int_to_ptr.vmem [resolvable:$true] %s1089
          %1092 = dma.vmem_to_hbm [thread:$0]  %s1090, 32, %s1087, %s1075
        $region48: #{tpu_custom_call.1} parent=43 // pred_fallthru
          _
      $region44: #{tpu_custom_call.1} parent=5 // pred_fallthru
        _
      %p1093 = scmp.le.s32.totalorder 2, %s15
      // Predicated region
      $region49: #{tpu_custom_call.1} parent=5 // pred_check
        %p1094 = pneg %p1093
      $region50: #{tpu_custom_call.1} parent=5 // pred_check_branch
        %1096 = sbr.rel (%p1094) target = $region52
      $region51: #{tpu_custom_call.1} parent=5 // pred_region
        %s1097 = ssub.s32 %s15, 2
        // Predicated region
        $region53: #{tpu_custom_call.1} parent=51 // pred_check
          %p1098 = pneg %p175
        $region54: #{tpu_custom_call.1} parent=51 // pred_check_branch
          %1100 = sbr.rel (%p1098) target = $region56
        $region55: #{tpu_custom_call.1} parent=51 // pred_region
          %s1101 = sand.u32 %s160, 1
          %s1102 = scalar_lea.sflag [#allocation3], %s1101
          %s1103 = sand.u32 %s160, 1
          %s1104 = smul.addr %s1103, 2
          %s1105 = scalar_lea.vmem [#allocation2], %s1104
          %1106 = dma.done %s1102, 32
        $region56: #{tpu_custom_call.1} parent=51 // pred_fallthru
          _
      $region52: #{tpu_custom_call.1} parent=5 // pred_fallthru
        _
    $region6: #{tpu_custom_call.1} parent=1 // loop_footer
      %s19 = sadd.s32 1, %s15
    $region7: #{tpu_custom_call.1} parent=1 // loop_footer_branch
      %14 = sbr.rel target = $region3
    $region8: #{tpu_custom_call.1} parent=1 // loop_exit
      _
    %1107 = vsyncpa [#allocation3], 1
    %s1108 = scalar_lea.sflag [#allocation3], 1
    %1109 = vsyncpa %s1108, 1

// kernel: tpu_custom_call.1
$region0: #{tpu_custom_call.1}
  #allocation0 [shape = 'u32[]', space=smem, size = 0x4, offset = 0x4, fixed_abs, tag = 'smem constant byte address 0x4 - core index']
  #allocation1 [shape = 'u32[144,128]{1,0:T(1,128)}', space=vmem, size = 0x12000, scoped, tag = 'internal scratch']
  %s0 = inlined_call_operand.vmem [shape: f32[2,8,32], index: 0, kind: input, shape index: {}]
  %s1 = inlined_call_operand.vmem [shape: f32[1,32], index: 1, kind: input, shape index: {}]
  %s2 = inlined_call_operand.vmem [shape: bf16[32,192], index: 2, kind: input, shape index: {}]
  %s3 = inlined_call_operand.vmem [shape: bf16[64,32], index: 3, kind: input, shape index: {}]
  %s4 = inlined_call_operand.vmem [shape: f32[4,1,16], index: 4, kind: input, shape index: {}]
  %s5 = inlined_call_operand.vmem [shape: f32[4,1,16], index: 5, kind: input, shape index: {}]
  %s6 = inlined_call_operand.hbm [shape: f32[2,1,256], index: 6, kind: output, shape index: {}]
  %s7 = sld [smem:[#allocation0]]
  $region57: #{tpu_custom_call.1} parent=0
    _
  %s9 = ssub.s32 1, %s7
  %s10 = scalar_select 0, %s9, %s7
  $region1: #{tpu_custom_call.1} parent=0
    #allocation2 [shape = 'u8[2048]{0}', space=vmem, size = 0x800, scoped, tag = 'output window, operand 0']
    #allocation3 [shape = 's32[2]{0}', space=sflag, size = 0x8, scoped, tag = 'scoped memory for tpu_custom_call.1']
    %11 = vsyncpa [#allocation3], 0
    %s12 = scalar_lea.sflag [#allocation3], 1
    %13 = vsyncpa %s12, 0
    loop: start=0, step=1, limit=4
    $region2: #{tpu_custom_call.1} parent=1 // loop_pre_header
      _
    $region3: #{tpu_custom_call.1} parent=1 // loop_header
      %s15 = sphi 0, %s19
      %p16 = scmp.ge.s32.totalorder %s15, 4
      %s25 = sphi 0, %s27
      %s28 = sphi 0, %s25
      %s29 = sphi 0, %s28
      %s45 = sphi 0, %s29
      %s49 = sphi 0, %s49
      %s51 = sphi 0, %s49
      %s52 = sphi 0, %s51
      %s66 = sphi 0, %s52
      %s70 = sphi 0, %s70
      %s72 = sphi 0, %s70
      %s73 = sphi 0, %s72
      %s87 = sphi 0, %s73
      %s91 = sphi 0, %s91
      %s93 = sphi 0, %s91
      %s94 = sphi 0, %s93
      %s108 = sphi 0, %s94
      %s112 = sphi 0, %s112
      %s114 = sphi 0, %s112
      %s115 = sphi 0, %s114
      %s129 = sphi 0, %s115
      %s133 = sphi 0, %s133
      %s135 = sphi 0, %s133
      %s136 = sphi 0, %s135
      %s150 = sphi 0, %s136
      %s156 = sphi 0, %s158
      %s159 = sphi 0, %s156
      %s160 = sphi 0, %s159
      %s176 = sphi 0, %s160
    $region4: #{tpu_custom_call.1} parent=1 // loop_header_branch
      %18 = sbr.rel (%p16) target = $region8
    $region5: #{tpu_custom_call.1} parent=1 // loop_body
      %s20 = ssub.s32 %s15, 1
      %s21 = ssub.s32 %s15, 2
      %s22 = sadd.s32 %s15, 1
      %s23 = ssub.s32 %s15, %s22
      %p24 = scmp.eq.s32.totalorder %s23, 0
      %s26 = sadd.s32 %s25, 1
      %s27 = scalar_select %p24, %s25, %s26
      %p30 = pneg %p24
      %p31 = scmp.eq.s32.totalorder %s15, 1
      %p32 = por %p30, %p31
      %p33 = scmp.ne.s32.totalorder %s25, %s28
      %p34 = scmp.eq.s32.totalorder %s15, 0
      %p35 = por %p33, %p34
      %p36 = scmp.ne.s32.totalorder %s25, %s28
      %p37 = scmp.eq.s32.totalorder %s20, 1
      %p38 = por %p36, %p37
      %p39 = scmp.ne.s32.totalorder %s28, %s29
      %p40 = scmp.eq.s32.totalorder %s20, 0
      %p41 = por %p39, %p40
      %p42 = scmp.ne.s32.totalorder %s28, %s29
      %p43 = scmp.eq.s32.totalorder %s21, 1
      %p44 = por %p42, %p43
      %p46 = scmp.ne.s32.totalorder %s29, %s45
      %p47 = scmp.eq.s32.totalorder %s21, 0
      %p48 = por %p46, %p47
      %s50 = sadd.s32 %s49, 1
      %p53 = scmp.eq.s32.totalorder %s15, 1
      %p54 = scmp.ne.s32.totalorder %s49, %s51
      %p55 = scmp.eq.s32.totalorder %s15, 0
      %p56 = por %p54, %p55
      %p57 = scmp.ne.s32.totalorder %s49, %s51
      %p58 = scmp.eq.s32.totalorder %s20, 1
      %p59 = por %p57, %p58
      %p60 = scmp.ne.s32.totalorder %s51, %s52
      %p61 = scmp.eq.s32.totalorder %s20, 0
      %p62 = por %p60, %p61
      %p63 = scmp.ne.s32.totalorder %s51, %s52
      %p64 = scmp.eq.s32.totalorder %s21, 1
      %p65 = por %p63, %p64
      %p67 = scmp.ne.s32.totalorder %s52, %s66
      %p68 = scmp.eq.s32.totalorder %s21, 0
      %p69 = por %p67, %p68
      %s71 = sadd.s32 %s70, 1
      %p74 = scmp.eq.s32.totalorder %s15, 1
      %p75 = scmp.ne.s32.totalorder %s70, %s72
      %p76 = scmp.eq.s32.totalorder %s15, 0
      %p77 = por %p75, %p76
      %p78 = scmp.ne.s32.totalorder %s70, %s72
      %p79 = scmp.eq.s32.totalorder %s20, 1
      %p80 = por %p78, %p79
      %p81 = scmp.ne.s32.totalorder %s72, %s73
      %p82 = scmp.eq.s32.totalorder %s20, 0
      %p83 = por %p81, %p82
      %p84 = scmp.ne.s32.totalorder %s72, %s73
      %p85 = scmp.eq.s32.totalorder %s21, 1
      %p86 = por %p84, %p85
      %p88 = scmp.ne.s32.totalorder %s73, %s87
      %p89 = scmp.eq.s32.totalorder %s21, 0
      %p90 = por %p88, %p89
      %s92 = sadd.s32 %s91, 1
      %p95 = scmp.eq.s32.totalorder %s15, 1
      %p96 = scmp.ne.s32.totalorder %s91, %s93
      %p97 = scmp.eq.s32.totalorder %s15, 0
      %p98 = por %p96, %p97
      %p99 = scmp.ne.s32.totalorder %s91, %s93
      %p100 = scmp.eq.s32.totalorder %s20, 1
      %p101 = por %p99, %p100
      %p102 = scmp.ne.s32.totalorder %s93, %s94
      %p103 = scmp.eq.s32.totalorder %s20, 0
      %p104 = por %p102, %p103
      %p105 = scmp.ne.s32.totalorder %s93, %s94
      %p106 = scmp.eq.s32.totalorder %s21, 1
      %p107 = por %p105, %p106
      %p109 = scmp.ne.s32.totalorder %s94, %s108
      %p110 = scmp.eq.s32.totalorder %s21, 0
      %p111 = por %p109, %p110
      %s113 = sadd.s32 %s112, 1
      %p116 = scmp.eq.s32.totalorder %s15, 1
      %p117 = scmp.ne.s32.totalorder %s112, %s114
      %p118 = scmp.eq.s32.totalorder %s15, 0
      %p119 = por %p117, %p118
      %p120 = scmp.ne.s32.totalorder %s112, %s114
      %p121 = scmp.eq.s32.totalorder %s20, 1
      %p122 = por %p120, %p121
      %p123 = scmp.ne.s32.totalorder %s114, %s115
      %p124 = scmp.eq.s32.totalorder %s20, 0
      %p125 = por %p123, %p124
      %p126 = scmp.ne.s32.totalorder %s114, %s115
      %p127 = scmp.eq.s32.totalorder %s21, 1
      %p128 = por %p126, %p127
      %p130 = scmp.ne.s32.totalorder %s115, %s129
      %p131 = scmp.eq.s32.totalorder %s21, 0
      %p132 = por %p130, %p131
      %s134 = sadd.s32 %s133, 1
      %p137 = scmp.eq.s32.totalorder %s15, 1
      %p138 = scmp.ne.s32.totalorder %s133, %s135
      %p139 = scmp.eq.s32.totalorder %s15, 0
      %p140 = por %p138, %p139
      %p141 = scmp.ne.s32.totalorder %s133, %s135
      %p142 = scmp.eq.s32.totalorder %s20, 1
      %p143 = por %p141, %p142
      %p144 = scmp.ne.s32.totalorder %s135, %s136
      %p145 = scmp.eq.s32.totalorder %s20, 0
      %p146 = por %p144, %p145
      %p147 = scmp.ne.s32.totalorder %s135, %s136
      %p148 = scmp.eq.s32.totalorder %s21, 1
      %p149 = por %p147, %p148
      %p151 = scmp.ne.s32.totalorder %s136, %s150
      %p152 = scmp.eq.s32.totalorder %s21, 0
      %p153 = por %p151, %p152
      %s154 = ssub.s32 %s15, %s22
      %p155 = scmp.eq.s32.totalorder %s154, 0
      %s157 = sadd.s32 %s156, 1
      %s158 = scalar_select %p155, %s156, %s157
      %p161 = pneg %p155
      %p162 = scmp.eq.s32.totalorder %s15, 1
      %p163 = por %p161, %p162
      %p164 = scmp.ne.s32.totalorder %s156, %s159
      %p165 = scmp.eq.s32.totalorder %s15, 0
      %p166 = por %p164, %p165
      %p167 = scmp.ne.s32.totalorder %s156, %s159
      %p168 = scmp.eq.s32.totalorder %s20, 1
      %p169 = por %p167, %p168
      %p170 = scmp.ne.s32.totalorder %s159, %s160
      %p171 = scmp.eq.s32.totalorder %s20, 0
      %p172 = por %p170, %p171
      %p173 = scmp.ne.s32.totalorder %s159, %s160
      %p174 = scmp.eq.s32.totalorder %s21, 1
      %p175 = por %p173, %p174
      %p177 = scmp.ne.s32.totalorder %s160, %s176
      %p178 = scmp.eq.s32.totalorder %s21, 0
      %p179 = por %p177, %p178
      %p180 = scmp.le.s32.totalorder 1, %s15
      %p181 = scmp.lt.s32.totalorder %s15, 3
      %p182 = pnand %p180, %p181
      %p183 = pneg %p182
      // Predicated region
      $region9: #{tpu_custom_call.1} parent=5 // pred_check
        _
      $region10: #{tpu_custom_call.1} parent=5 // pred_check_branch
        %185 = sbr.rel (%p182) target = $region12
      $region11: #{tpu_custom_call.1} parent=5 // pred_region
        %s186 = ssub.s32 %s15, 1
        // Predicated region
        $region13: #{tpu_custom_call.1} parent=11 // pred_check
          %p187 = pneg %p62
        $region14: #{tpu_custom_call.1} parent=11 // pred_check_branch
          %189 = sbr.rel (%p187) target = $region16
        $region15: #{tpu_custom_call.1} parent=11 // pred_region
          _
        $region16: #{tpu_custom_call.1} parent=11 // pred_fallthru
          _
        // Predicated region
        $region17: #{tpu_custom_call.1} parent=11 // pred_check
          %p190 = pneg %p83
        $region18: #{tpu_custom_call.1} parent=11 // pred_check_branch
          %192 = sbr.rel (%p190) target = $region20
        $region19: #{tpu_custom_call.1} parent=11 // pred_region
          _
        $region20: #{tpu_custom_call.1} parent=11 // pred_fallthru
          _
        // Predicated region
        $region21: #{tpu_custom_call.1} parent=11 // pred_check
          %p193 = pneg %p104
        $region22: #{tpu_custom_call.1} parent=11 // pred_check_branch
          %195 = sbr.rel (%p193) target = $region24
        $region23: #{tpu_custom_call.1} parent=11 // pred_region
          _
        $region24: #{tpu_custom_call.1} parent=11 // pred_fallthru
          _
        // Predicated region
        $region25: #{tpu_custom_call.1} parent=11 // pred_check
          %p196 = pneg %p125
        $region26: #{tpu_custom_call.1} parent=11 // pred_check_branch
          %198 = sbr.rel (%p196) target = $region28
        $region27: #{tpu_custom_call.1} parent=11 // pred_region
          _
        $region28: #{tpu_custom_call.1} parent=11 // pred_fallthru
          _
        // Predicated region
        $region29: #{tpu_custom_call.1} parent=11 // pred_check
          %p199 = pneg %p146
        $region30: #{tpu_custom_call.1} parent=11 // pred_check_branch
          %201 = sbr.rel (%p199) target = $region32
        $region31: #{tpu_custom_call.1} parent=11 // pred_region
          _
        $region32: #{tpu_custom_call.1} parent=11 // pred_fallthru
          _
      $region12: #{tpu_custom_call.1} parent=5 // pred_fallthru
        _
      %p202 = scmp.lt.s32.totalorder %s15, 2
      // Predicated region
      $region33: #{tpu_custom_call.1} parent=5 // pred_check
        %p203 = pneg %p202
      $region34: #{tpu_custom_call.1} parent=5 // pred_check_branch
        %205 = sbr.rel (%p203) target = $region36
      $region35: #{tpu_custom_call.1} parent=5 // pred_region
        // Predicated region
        $region37: #{tpu_custom_call.1} parent=35 // pred_check
          %p206 = pneg %p35
        $region38: #{tpu_custom_call.1} parent=35 // pred_check_branch
          %208 = sbr.rel (%p206) target = $region40
        $region39: #{tpu_custom_call.1} parent=35 // pred_region
          %p209 = scmp.lt.s32.totalorder %s15, 1
          %s210 = scalar_select %p209, %s15, 1
          %s211 = smul.addr %s210, 8
          %s212 = scalar_lea.vmem %s0, %s211
        $region40: #{tpu_custom_call.1} parent=35 // pred_fallthru
          _
      $region36: #{tpu_custom_call.1} parent=5 // pred_fallthru
        _
      %p213 = scmp.le.s32.totalorder 1, %s15
      %p214 = scmp.lt.s32.totalorder %s15, 3
      %p215 = pnand %p213, %p214
      %p216 = pneg %p215
      // Predicated region
      $region41: #{tpu_custom_call.1} parent=5 // pred_check
        _
      $region42: #{tpu_custom_call.1} parent=5 // pred_check_branch
        %218 = sbr.rel (%p215) target = $region44
      $region43: #{tpu_custom_call.1} parent=5 // pred_region
        %s219 = ssub.s32 %s15, 1
        %p220 = scmp.lt.s32.totalorder %s20, 1
        %s221 = scalar_select %p220, %s20, 1
        %s222 = smul.addr %s221, 8
        %s223 = scalar_lea.vmem %s0, %s222
        %p224 = pneg %p41
        %p225 = pneg %p38
        %p226 = pneg %p62
        %p227 = pneg %p59
        %p228 = pneg %p83
        %p229 = pneg %p80
        %p230 = pneg %p104
        %p231 = pneg %p101
        %p232 = pneg %p125
        %p233 = pneg %p122
        %p234 = pneg %p146
        %p235 = pneg %p143
        %p236 = pneg %p172
        %p237 = pneg %p169
        %s238 = sand.u32 %s159, 1
        %s239 = scalar_lea.sflag [#allocation3], %s238
        %s240 = sand.u32 %s159, 1
        %s241 = smul.addr %s240, 2
        %s242 = scalar_lea.vmem [#allocation2], %s241
        %p243 = scmp.lt.s32.totalorder %s20, 1
        %s244 = scalar_select %p243, %s20, 1
        %s245 = smul.addr %s244, 8
        %s246 = scalar_lea.vmem %s0, %s245
        %v248 = vld [vmem:[%s246] sm:$0xff]
        %vm249 = vcmask 261120
        %v250 = vsel %vm249, %v248, 0.0
        %251 = vadd.xlane.f32.xlu0 %v250
        %v252 = vpop.xlane.xlu0 %251
        %v253 = vrcp.pop 32.0
        %v254 = vmul.f32 %v252, %v253
        %v255 = vsub.f32 %v248, %v254
        %v256 = vmul.f32 %v255, %v255
        %v257 = vsel %vm249, %v256, 0.0
        %258 = vadd.xlane.f32.xlu0 %v257
        %v259 = vpop.xlane.xlu0 %258
        %v260 = vmul.f32 %v259, %v253
        %v261 = vadd.f32 %v260, 1e-05
        %v262 = vrsqrt.pop %v261
        %v263 = vmul.f32 %v255, %v262
        %v264 = vld [vmem:[%s1] sm:$0x1]
        %v266 = vlaneseq
        %v267 = vshrl.u32 %v266, 7
        %v268 = vsub.s32 0, %v267
        %v269 = vrot.slane %v264, %v268
        %v271 = vmul.f32 %v263, %v269
        %v272 = vpack.c.bf16 %v271, %v271
        %v273 = vld [vmem:[%s2] sm:$0xff]
        %v274 = vld [vmem:[%s2 + $0x8] sm:$0xff]
        %v275 = vld [vmem:[%s2 + $0x10] sm:$0xff]
        %v276 = vld [vmem:[%s2 + $0x18] sm:$0xff]
        %v281 = vunpack.c.l.b16 %v273
        %v282 = vunpack.c.h.b16 %v273
        %v283 = vunpack.c.l.b16 %v274
        %v284 = vunpack.c.h.b16 %v274
        %v285 = vunpack.c.l.b16 %v275
        %v286 = vunpack.c.h.b16 %v275
        %v287 = vunpack.c.l.b16 %v276
        %v288 = vunpack.c.h.b16 %v276
        %v289 = vpack.c.b16 %v283, %v281
        %v290 = vpack.c.b16 %v284, %v282
        %v291 = vpack.c.b16 %v287, %v285
        %v292 = vpack.c.b16 %v288, %v286
        %v298 = vsel %vm249, %v272, 0
        %300 = vmatprep.subr.bf16.mxu0 0
        %301 = vmatpush1.bf16.msra.mxu0 0
        %302 = vmatprep.subr.bf16.mxu0 0
        %303 = vmatpush1.bf16.msra.mxu0 0
        %304 = vmatprep.subr.bf16.mxu0 0
        %305 = vmatpush1.bf16.msra.mxu0 0
        %306 = vmatprep.subr.bf16.mxu0 0
        %307 = vmatpush1.bf16.msra.mxu0 0
        %308 = vmatprep.subr.bf16.mxu0 0
        %309 = vmatpush1.bf16.msra.mxu0 0
        %310 = vmatprep.subr.bf16.mxu0 0
        %311 = vmatpush1.bf16.msra.mxu0 0
        %312 = vmatprep.subr.bf16.mxu0 %v292
        %313 = vmatpush1.bf16.msra.mxu0 %v291
        %314 = vmatprep.subr.bf16.mxu0 %v290
        %315 = vmatpush1.bf16.msra.mxu0 %v289
        %316 = vmatprep.subr.bf16.mxu0 0
        %317 = vmatpush2.bf16.msra.mxu0 0
        %318 = vmatprep.subr.bf16.mxu0 0
        %319 = vmatpush2.bf16.msra.mxu0 0
        %320 = vmatprep.subr.bf16.mxu0 0
        %321 = vmatpush2.bf16.msra.mxu0 0
        %322 = vmatprep.subr.bf16.mxu0 0
        %323 = vmatpush2.bf16.msra.mxu0 0
        %324 = vmatprep.subr.bf16.mxu0 0
        %325 = vmatpush2.bf16.msra.mxu0 0
        %326 = vmatprep.subr.bf16.mxu0 0
        %327 = vmatpush2.bf16.msra.mxu0 0
        %328 = vmatprep.subr.bf16.mxu0 0
        %329 = vmatpush2.bf16.msra.mxu0 0
        %330 = vmatprep.subr.bf16.mxu0 0
        %331 = vmatpush2.bf16.msra.mxu0 0
        %332 = vmatprep.mubr.bf16.mxu0 0
        %333 = vmatmul.mubr.bf16.gmra.mxu0 %v298
        %v334 = vpop.f32.mrf.mxu0
        %v335 = vadd.f32 0.0, %v334
        %v336 = vpop.f32.mrf.mxu0
        %v337 = vadd.f32 0.0, %v336
        %v338 = vpop.f32.mrf.mxu0
        %v339 = vpop.f32.mrf.mxu0
        %340 = vdwg.mxu0
        %342 = vrot.lane.b32.xlu0 %v335, 112
        %v343 = vpop.permute.xlu0 %342
        %345 = vrot.lane.b32.xlu0 %v335, 96
        %v346 = vpop.permute.xlu0 %345
        %348 = vrot.lane.b32.xlu0 %v335, 80
        %v349 = vpop.permute.xlu0 %348
        %351 = vrot.lane.b32.xlu0 %v335, 64
        %v352 = vpop.permute.xlu0 %351
        %354 = vrot.lane.b32.xlu0 %v335, 48
        %v355 = vpop.permute.xlu0 %354
        %357 = vrot.lane.b32.xlu0 %v335, 32
        %v358 = vpop.permute.xlu0 %357
        %360 = vrot.lane.b32.xlu0 %v335, 16
        %v361 = vpop.permute.xlu0 %360
        %364 = vrot.lane.b32.xlu0 %v337, 112
        %v365 = vpop.permute.xlu0 %364
        %367 = vrot.lane.b32.xlu0 %v337, 96
        %v368 = vpop.permute.xlu0 %367
        %370 = vrot.lane.b32.xlu0 %v337, 80
        %v371 = vpop.permute.xlu0 %370
        %v373 = vld [vmem:[%s4] sm:$0x1]
        %v374 = vld [vmem:[%s4 + $0x1] sm:$0x1]
        %v375 = vld [vmem:[%s4 + $0x2] sm:$0x1]
        %v376 = vld [vmem:[%s4 + $0x3] sm:$0x1]
        %v377 = vmul.f32 %v335, %v335
        %v378 = vmul.f32 %v343, %v343
        %v379 = vmul.f32 %v346, %v346
        %v380 = vmul.f32 %v349, %v349
        %vm381 = vcmask 130048
        %v382 = vsel %vm381, %v377, 0.0
        %383 = vadd.xlane.f32.xlu0 %v382
        %v384 = vpop.xlane.xlu0 %383
        %v385 = vsel %vm381, %v378, 0.0
        %386 = vadd.xlane.f32.xlu0 %v385
        %v387 = vpop.xlane.xlu0 %386
        %v388 = vsel %vm381, %v379, 0.0
        %389 = vadd.xlane.f32.xlu0 %v388
        %v390 = vpop.xlane.xlu0 %389
        %v391 = vsel %vm381, %v380, 0.0
        %392 = vadd.xlane.f32.xlu0 %v391
        %v393 = vpop.xlane.xlu0 %392
        %v394 = vmax.f32 %v384, 1e-24
        %v395 = vmax.f32 %v387, 1e-24
        %v396 = vmax.f32 %v390, 1e-24
        %v397 = vmax.f32 %v393, 1e-24
        %v398 = vrsqrt.pop %v394
        %v399 = vrsqrt.pop %v395
        %v400 = vrsqrt.pop %v396
        %v401 = vrsqrt.pop %v397
        %v402 = vmul.f32 %v335, %v398
        %v403 = vmul.f32 %v343, %v399
        %v404 = vmul.f32 %v346, %v400
        %v405 = vmul.f32 %v349, %v401
        %v410 = vlaneseq
        %v411 = vshrl.u32 %v410, 7
        %v412 = vsub.s32 0, %v411
        %v413 = vrot.slane %v373, %v412
        %v414 = vlaneseq
        %v415 = vshrl.u32 %v414, 7
        %v416 = vsub.s32 0, %v415
        %v417 = vrot.slane %v374, %v416
        %v418 = vlaneseq
        %v419 = vshrl.u32 %v418, 7
        %v420 = vsub.s32 0, %v419
        %v421 = vrot.slane %v375, %v420
        %v422 = vlaneseq
        %v423 = vshrl.u32 %v422, 7
        %v424 = vsub.s32 0, %v423
        %v425 = vrot.slane %v376, %v424
        %v430 = vmul.f32 %v402, %v413
        %v431 = vmul.f32 %v403, %v417
        %v432 = vmul.f32 %v404, %v421
        %v433 = vmul.f32 %v405, %v425
        %v434 = vld [vmem:[%s5] sm:$0x1]
        %v435 = vld [vmem:[%s5 + $0x1] sm:$0x1]
        %v436 = vld [vmem:[%s5 + $0x2] sm:$0x1]
        %v437 = vld [vmem:[%s5 + $0x3] sm:$0x1]
        %v438 = vmul.f32 %v352, %v352
        %v439 = vmul.f32 %v355, %v355
        %v440 = vmul.f32 %v358, %v358
        %v441 = vmul.f32 %v361, %v361
        %v442 = vsel %vm381, %v438, 0.0
        %443 = vadd.xlane.f32.xlu0 %v442
        %v444 = vpop.xlane.xlu0 %443
        %v445 = vsel %vm381, %v439, 0.0
        %446 = vadd.xlane.f32.xlu0 %v445
        %v447 = vpop.xlane.xlu0 %446
        %v448 = vsel %vm381, %v440, 0.0
        %449 = vadd.xlane.f32.xlu0 %v448
        %v450 = vpop.xlane.xlu0 %449
        %v451 = vsel %vm381, %v441, 0.0
        %452 = vadd.xlane.f32.xlu0 %v451
        %v453 = vpop.xlane.xlu0 %452
        %v454 = vmax.f32 %v444, 1e-24
        %v455 = vmax.f32 %v447, 1e-24
        %v456 = vmax.f32 %v450, 1e-24
        %v457 = vmax.f32 %v453, 1e-24
        %v458 = vrsqrt.pop %v454
        %v459 = vrsqrt.pop %v455
        %v460 = vrsqrt.pop %v456
        %v461 = vrsqrt.pop %v457
        %v462 = vmul.f32 %v352, %v458
        %v463 = vmul.f32 %v355, %v459
        %v464 = vmul.f32 %v358, %v460
        %v465 = vmul.f32 %v361, %v461
        %v470 = vlaneseq
        %v471 = vshrl.u32 %v470, 7
        %v472 = vsub.s32 0, %v471
        %v473 = vrot.slane %v434, %v472
        %v474 = vlaneseq
        %v475 = vshrl.u32 %v474, 7
        %v476 = vsub.s32 0, %v475
        %v477 = vrot.slane %v435, %v476
        %v478 = vlaneseq
        %v479 = vshrl.u32 %v478, 7
        %v480 = vsub.s32 0, %v479
        %v481 = vrot.slane %v436, %v480
        %v482 = vlaneseq
        %v483 = vshrl.u32 %v482, 7
        %v484 = vsub.s32 0, %v483
        %v485 = vrot.slane %v437, %v484
        %v490 = vmul.f32 %v462, %v473
        %v491 = vmul.f32 %v463, %v477
        %v492 = vmul.f32 %v464, %v481
        %v493 = vmul.f32 %v465, %v485
        %v494 = vpack.c.bf16 %v430, %v430
        %v495 = vpack.c.bf16 %v431, %v431
        %v496 = vpack.c.bf16 %v432, %v432
        %v497 = vpack.c.bf16 %v433, %v433
        %v498 = vpack.c.bf16 %v490, %v490
        %v499 = vpack.c.bf16 %v491, %v491
        %v500 = vpack.c.bf16 %v492, %v492
        %v501 = vpack.c.bf16 %v493, %v493
        %v503 = vsel %vm381, %v494, 0
        %v506 = vsel %vm381, %v498, 0
        %508 = vmatprep.subr.bf16.mxu0 0
        %509 = vmatpush1.bf16.xpose.msra.mxu0 0
        %510 = vmatprep.subr.bf16.mxu0 0
        %511 = vmatpush1.bf16.xpose.msra.mxu0 0
        %512 = vmatprep.subr.bf16.mxu0 0
        %513 = vmatpush1.bf16.xpose.msra.mxu0 0
        %514 = vmatprep.subr.bf16.mxu0 0
        %515 = vmatpush1.bf16.xpose.msra.mxu0 0
        %516 = vmatprep.subr.bf16.mxu0 0
        %517 = vmatpush1.bf16.xpose.msra.mxu0 0
        %518 = vmatprep.subr.bf16.mxu0 0
        %519 = vmatpush1.bf16.xpose.msra.mxu0 0
        %520 = vmatprep.subr.bf16.mxu0 0
        %521 = vmatpush1.bf16.xpose.msra.mxu0 0
        %522 = vmatprep.subr.bf16.mxu0 0
        %523 = vmatpush1.bf16.xpose.msra.mxu0 %v506
        %524 = vmatprep.subr.bf16.mxu0 0
        %525 = vmatpush2.bf16.xpose.msra.mxu0 0
        %526 = vmatprep.subr.bf16.mxu0 0
        %527 = vmatpush2.bf16.xpose.msra.mxu0 0
        %528 = vmatprep.subr.bf16.mxu0 0
        %529 = vmatpush2.bf16.xpose.msra.mxu0 0
        %530 = vmatprep.subr.bf16.mxu0 0
        %531 = vmatpush2.bf16.xpose.msra.mxu0 0
        %532 = vmatprep.subr.bf16.mxu0 0
        %533 = vmatpush2.bf16.xpose.msra.mxu0 0
        %534 = vmatprep.subr.bf16.mxu0 0
        %535 = vmatpush2.bf16.xpose.msra.mxu0 0
        %536 = vmatprep.subr.bf16.mxu0 0
        %537 = vmatpush2.bf16.xpose.msra.mxu0 0
        %538 = vmatprep.subr.bf16.mxu0 0
        %539 = vmatpush2.bf16.xpose.msra.mxu0 0
        %540 = vmatprep.mubr.bf16.mxu0 0
        %541 = vmatmul.mubr.bf16.gmra.mxu0 %v503
        %v542 = vpop.f32.mrf.mxu0
        %v543 = vadd.f32 0.0, %v542
        %v544 = vpop.f32.mrf.mxu0
        %v545 = vpop.f32.mrf.mxu0
        %v546 = vpop.f32.mrf.mxu0
        %547 = vdwg.mxu0
        %v549 = vsel %vm381, %v495, 0
        %v552 = vsel %vm381, %v499, 0
        %554 = vmatprep.subr.bf16.mxu0 0
        %555 = vmatpush1.bf16.xpose.msra.mxu0 0
        %556 = vmatprep.subr.bf16.mxu0 0
        %557 = vmatpush1.bf16.xpose.msra.mxu0 0
        %558 = vmatprep.subr.bf16.mxu0 0
        %559 = vmatpush1.bf16.xpose.msra.mxu0 0
        %560 = vmatprep.subr.bf16.mxu0 0
        %561 = vmatpush1.bf16.xpose.msra.mxu0 0
        %562 = vmatprep.subr.bf16.mxu0 0
        %563 = vmatpush1.bf16.xpose.msra.mxu0 0
        %564 = vmatprep.subr.bf16.mxu0 0
        %565 = vmatpush1.bf16.xpose.msra.mxu0 0
        %566 = vmatprep.subr.bf16.mxu0 0
        %567 = vmatpush1.bf16.xpose.msra.mxu0 0
        %568 = vmatprep.subr.bf16.mxu0 0
        %569 = vmatpush1.bf16.xpose.msra.mxu0 %v552
        %570 = vmatprep.subr.bf16.mxu0 0
        %571 = vmatpush2.bf16.xpose.msra.mxu0 0
        %572 = vmatprep.subr.bf16.mxu0 0
        %573 = vmatpush2.bf16.xpose.msra.mxu0 0
        %574 = vmatprep.subr.bf16.mxu0 0
        %575 = vmatpush2.bf16.xpose.msra.mxu0 0
        %576 = vmatprep.subr.bf16.mxu0 0
        %577 = vmatpush2.bf16.xpose.msra.mxu0 0
        %578 = vmatprep.subr.bf16.mxu0 0
        %579 = vmatpush2.bf16.xpose.msra.mxu0 0
        %580 = vmatprep.subr.bf16.mxu0 0
        %581 = vmatpush2.bf16.xpose.msra.mxu0 0
        %582 = vmatprep.subr.bf16.mxu0 0
        %583 = vmatpush2.bf16.xpose.msra.mxu0 0
        %584 = vmatprep.subr.bf16.mxu0 0
        %585 = vmatpush2.bf16.xpose.msra.mxu0 0
        %586 = vmatprep.mubr.bf16.mxu0 0
        %587 = vmatmul.mubr.bf16.gmra.mxu0 %v549
        %v588 = vpop.f32.mrf.mxu0
        %v589 = vadd.f32 0.0, %v588
        %v590 = vpop.f32.mrf.mxu0
        %v591 = vpop.f32.mrf.mxu0
        %v592 = vpop.f32.mrf.mxu0
        %593 = vdwg.mxu0
        %v595 = vsel %vm381, %v496, 0
        %v598 = vsel %vm381, %v500, 0
        %600 = vmatprep.subr.bf16.mxu0 0
        %601 = vmatpush1.bf16.xpose.msra.mxu0 0
        %602 = vmatprep.subr.bf16.mxu0 0
        %603 = vmatpush1.bf16.xpose.msra.mxu0 0
        %604 = vmatprep.subr.bf16.mxu0 0
        %605 = vmatpush1.bf16.xpose.msra.mxu0 0
        %606 = vmatprep.subr.bf16.mxu0 0
        %607 = vmatpush1.bf16.xpose.msra.mxu0 0
        %608 = vmatprep.subr.bf16.mxu0 0
        %609 = vmatpush1.bf16.xpose.msra.mxu0 0
        %610 = vmatprep.subr.bf16.mxu0 0
        %611 = vmatpush1.bf16.xpose.msra.mxu0 0
        %612 = vmatprep.subr.bf16.mxu0 0
        %613 = vmatpush1.bf16.xpose.msra.mxu0 0
        %614 = vmatprep.subr.bf16.mxu0 0
        %615 = vmatpush1.bf16.xpose.msra.mxu0 %v598
        %616 = vmatprep.subr.bf16.mxu0 0
        %617 = vmatpush2.bf16.xpose.msra.mxu0 0
        %618 = vmatprep.subr.bf16.mxu0 0
        %619 = vmatpush2.bf16.xpose.msra.mxu0 0
        %620 = vmatprep.subr.bf16.mxu0 0
        %621 = vmatpush2.bf16.xpose.msra.mxu0 0
        %622 = vmatprep.subr.bf16.mxu0 0
        %623 = vmatpush2.bf16.xpose.msra.mxu0 0
        %624 = vmatprep.subr.bf16.mxu0 0
        %625 = vmatpush2.bf16.xpose.msra.mxu0 0
        %626 = vmatprep.subr.bf16.mxu0 0
        %627 = vmatpush2.bf16.xpose.msra.mxu0 0
        %628 = vmatprep.subr.bf16.mxu0 0
        %629 = vmatpush2.bf16.xpose.msra.mxu0 0
        %630 = vmatprep.subr.bf16.mxu0 0
        %631 = vmatpush2.bf16.xpose.msra.mxu0 0
        %632 = vmatprep.mubr.bf16.mxu0 0
        %633 = vmatmul.mubr.bf16.gmra.mxu0 %v595
        %v634 = vpop.f32.mrf.mxu0
        %v635 = vadd.f32 0.0, %v634
        %v636 = vpop.f32.mrf.mxu0
        %v637 = vpop.f32.mrf.mxu0
        %v638 = vpop.f32.mrf.mxu0
        %639 = vdwg.mxu0
        %v641 = vsel %vm381, %v497, 0
        %v644 = vsel %vm381, %v501, 0
        %646 = vmatprep.subr.bf16.mxu0 0
        %647 = vmatpush1.bf16.xpose.msra.mxu0 0
        %648 = vmatprep.subr.bf16.mxu0 0
        %649 = vmatpush1.bf16.xpose.msra.mxu0 0
        %650 = vmatprep.subr.bf16.mxu0 0
        %651 = vmatpush1.bf16.xpose.msra.mxu0 0
        %652 = vmatprep.subr.bf16.mxu0 0
        %653 = vmatpush1.bf16.xpose.msra.mxu0 0
        %654 = vmatprep.subr.bf16.mxu0 0
        %655 = vmatpush1.bf16.xpose.msra.mxu0 0
        %656 = vmatprep.subr.bf16.mxu0 0
        %657 = vmatpush1.bf16.xpose.msra.mxu0 0
        %658 = vmatprep.subr.bf16.mxu0 0
        %659 = vmatpush1.bf16.xpose.msra.mxu0 0
        %660 = vmatprep.subr.bf16.mxu0 0
        %661 = vmatpush1.bf16.xpose.msra.mxu0 %v644
        %662 = vmatprep.subr.bf16.mxu0 0
        %663 = vmatpush2.bf16.xpose.msra.mxu0 0
        %664 = vmatprep.subr.bf16.mxu0 0
        %665 = vmatpush2.bf16.xpose.msra.mxu0 0
        %666 = vmatprep.subr.bf16.mxu0 0
        %667 = vmatpush2.bf16.xpose.msra.mxu0 0
        %668 = vmatprep.subr.bf16.mxu0 0
        %669 = vmatpush2.bf16.xpose.msra.mxu0 0
        %670 = vmatprep.subr.bf16.mxu0 0
        %671 = vmatpush2.bf16.xpose.msra.mxu0 0
        %672 = vmatprep.subr.bf16.mxu0 0
        %673 = vmatpush2.bf16.xpose.msra.mxu0 0
        %674 = vmatprep.subr.bf16.mxu0 0
        %675 = vmatpush2.bf16.xpose.msra.mxu0 0
        %676 = vmatprep.subr.bf16.mxu0 0
        %677 = vmatpush2.bf16.xpose.msra.mxu0 0
        %678 = vmatprep.mubr.bf16.mxu0 0
        %679 = vmatmul.mubr.bf16.gmra.mxu0 %v641
        %v680 = vpop.f32.mrf.mxu0
        %v681 = vadd.f32 0.0, %v680
        %v682 = vpop.f32.mrf.mxu0
        %v683 = vpop.f32.mrf.mxu0
        %v684 = vpop.f32.mrf.mxu0
        %685 = vdwg.mxu0
        %vm686 = vcmask 64512
        %v687 = vsel %vm686, %v543, -inf
        %688 = vmax.xlane.f32.xlu0 %v687
        %v689 = vpop.xlane.xlu0 %688
        %v690 = vsel %vm686, %v589, -inf
        %691 = vmax.xlane.f32.xlu0 %v690
        %v692 = vpop.xlane.xlu0 %691
        %v693 = vsel %vm686, %v635, -inf
        %694 = vmax.xlane.f32.xlu0 %v693
        %v695 = vpop.xlane.xlu0 %694
        %v696 = vsel %vm686, %v681, -inf
        %697 = vmax.xlane.f32.xlu0 %v696
        %v698 = vpop.xlane.xlu0 %697
        %v699 = vsub.f32 %v543, %v689
        %v700 = vsub.f32 %v589, %v692
        %v701 = vsub.f32 %v635, %v695
        %v702 = vsub.f32 %v681, %v698
        %v703 = vmul.f32 %v699, 1.442695
        %v704 = vpow.pop %v703
        %v705 = vmul.f32 %v700, 1.442695
        %v706 = vpow.pop %v705
        %v707 = vmul.f32 %v701, 1.442695
        %v708 = vpow.pop %v707
        %v709 = vmul.f32 %v702, 1.442695
        %v710 = vpow.pop %v709
        %v711 = vsel %vm686, %v704, 0.0
        %712 = vadd.xlane.f32.xlu0 %v711
        %v713 = vpop.xlane.xlu0 %712
        %v714 = vsel %vm686, %v706, 0.0
        %715 = vadd.xlane.f32.xlu0 %v714
        %v716 = vpop.xlane.xlu0 %715
        %v717 = vsel %vm686, %v708, 0.0
        %718 = vadd.xlane.f32.xlu0 %v717
        %v719 = vpop.xlane.xlu0 %718
        %v720 = vsel %vm686, %v710, 0.0
        %721 = vadd.xlane.f32.xlu0 %v720
        %v722 = vpop.xlane.xlu0 %721
        %v723 = vrcp.pop %v713
        %v724 = vrcp.pop %v716
        %v725 = vrcp.pop %v719
        %v726 = vrcp.pop %v722
        %v727 = vmul.f32 %v704, %v723
        %v728 = vmul.f32 %v706, %v724
        %v729 = vmul.f32 %v708, %v725
        %v730 = vmul.f32 %v710, %v726
        %v731 = vpack.c.bf16 %v727, %v727
        %v732 = vpack.c.bf16 %v728, %v728
        %v733 = vpack.c.bf16 %v729, %v729
        %v734 = vpack.c.bf16 %v730, %v730
        %v735 = vpack.c.bf16 %v337, %v337
        %v736 = vpack.c.bf16 %v365, %v365
        %v737 = vpack.c.bf16 %v368, %v368
        %v738 = vpack.c.bf16 %v371, %v371
        %v740 = vsel %vm686, %v731, 0
        %vm742 = vcmask 1043456
        %v744 = vsel %vm742, %v735, 0
        %746 = vmatprep.subr.bf16.mxu0 0
        %747 = vmatpush1.bf16.msra.mxu0 0
        %748 = vmatprep.subr.bf16.mxu0 0
        %749 = vmatpush1.bf16.msra.mxu0 0
        %750 = vmatprep.subr.bf16.mxu0 0
        %751 = vmatpush1.bf16.msra.mxu0 0
        %752 = vmatprep.subr.bf16.mxu0 0
        %753 = vmatpush1.bf16.msra.mxu0 0
        %754 = vmatprep.subr.bf16.mxu0 0
        %755 = vmatpush1.bf16.msra.mxu0 0
        %756 = vmatprep.subr.bf16.mxu0 0
        %757 = vmatpush1.bf16.msra.mxu0 0
        %758 = vmatprep.subr.bf16.mxu0 0
        %759 = vmatpush1.bf16.msra.mxu0 0
        %760 = vmatprep.subr.bf16.mxu0 0
        %761 = vmatpush1.bf16.msra.mxu0 %v744
        %762 = vmatprep.subr.bf16.mxu0 0
        %763 = vmatpush2.bf16.msra.mxu0 0
        %764 = vmatprep.subr.bf16.mxu0 0
        %765 = vmatpush2.bf16.msra.mxu0 0
        %766 = vmatprep.subr.bf16.mxu0 0
        %767 = vmatpush2.bf16.msra.mxu0 0
        %768 = vmatprep.subr.bf16.mxu0 0
        %769 = vmatpush2.bf16.msra.mxu0 0
        %770 = vmatprep.subr.bf16.mxu0 0
        %771 = vmatpush2.bf16.msra.mxu0 0
        %772 = vmatprep.subr.bf16.mxu0 0
        %773 = vmatpush2.bf16.msra.mxu0 0
        %774 = vmatprep.subr.bf16.mxu0 0
        %775 = vmatpush2.bf16.msra.mxu0 0
        %776 = vmatprep.subr.bf16.mxu0 0
        %777 = vmatpush2.bf16.msra.mxu0 0
        %778 = vmatprep.mubr.bf16.mxu0 0
        %779 = vmatmul.mubr.bf16.gmra.mxu0 %v740
        %v780 = vpop.f32.mrf.mxu0
        %v781 = vadd.f32 0.0, %v780
        %v782 = vpop.f32.mrf.mxu0
        %v783 = vpop.f32.mrf.mxu0
        %v784 = vpop.f32.mrf.mxu0
        %785 = vdwg.mxu0
        %v787 = vsel %vm686, %v732, 0
        %v790 = vsel %vm742, %v736, 0
        %792 = vmatprep.subr.bf16.mxu0 0
        %793 = vmatpush1.bf16.msra.mxu0 0
        %794 = vmatprep.subr.bf16.mxu0 0
        %795 = vmatpush1.bf16.msra.mxu0 0
        %796 = vmatprep.subr.bf16.mxu0 0
        %797 = vmatpush1.bf16.msra.mxu0 0
        %798 = vmatprep.subr.bf16.mxu0 0
        %799 = vmatpush1.bf16.msra.mxu0 0
        %800 = vmatprep.subr.bf16.mxu0 0
        %801 = vmatpush1.bf16.msra.mxu0 0
        %802 = vmatprep.subr.bf16.mxu0 0
        %803 = vmatpush1.bf16.msra.mxu0 0
        %804 = vmatprep.subr.bf16.mxu0 0
        %805 = vmatpush1.bf16.msra.mxu0 0
        %806 = vmatprep.subr.bf16.mxu0 0
        %807 = vmatpush1.bf16.msra.mxu0 %v790
        %808 = vmatprep.subr.bf16.mxu0 0
        %809 = vmatpush2.bf16.msra.mxu0 0
        %810 = vmatprep.subr.bf16.mxu0 0
        %811 = vmatpush2.bf16.msra.mxu0 0
        %812 = vmatprep.subr.bf16.mxu0 0
        %813 = vmatpush2.bf16.msra.mxu0 0
        %814 = vmatprep.subr.bf16.mxu0 0
        %815 = vmatpush2.bf16.msra.mxu0 0
        %816 = vmatprep.subr.bf16.mxu0 0
        %817 = vmatpush2.bf16.msra.mxu0 0
        %818 = vmatprep.subr.bf16.mxu0 0
        %819 = vmatpush2.bf16.msra.mxu0 0
        %820 = vmatprep.subr.bf16.mxu0 0
        %821 = vmatpush2.bf16.msra.mxu0 0
        %822 = vmatprep.subr.bf16.mxu0 0
        %823 = vmatpush2.bf16.msra.mxu0 0
        %824 = vmatprep.mubr.bf16.mxu0 0
        %825 = vmatmul.mubr.bf16.gmra.mxu0 %v787
        %v826 = vpop.f32.mrf.mxu0
        %v827 = vadd.f32 0.0, %v826
        %v828 = vpop.f32.mrf.mxu0
        %v829 = vpop.f32.mrf.mxu0
        %v830 = vpop.f32.mrf.mxu0
        %831 = vdwg.mxu0
        %v833 = vsel %vm686, %v733, 0
        %v836 = vsel %vm742, %v737, 0
        %838 = vmatprep.subr.bf16.mxu0 0
        %839 = vmatpush1.bf16.msra.mxu0 0
        %840 = vmatprep.subr.bf16.mxu0 0
        %841 = vmatpush1.bf16.msra.mxu0 0
        %842 = vmatprep.subr.bf16.mxu0 0
        %843 = vmatpush1.bf16.msra.mxu0 0
        %844 = vmatprep.subr.bf16.mxu0 0
        %845 = vmatpush1.bf16.msra.mxu0 0
        %846 = vmatprep.subr.bf16.mxu0 0
        %847 = vmatpush1.bf16.msra.mxu0 0
        %848 = vmatprep.subr.bf16.mxu0 0
        %849 = vmatpush1.bf16.msra.mxu0 0
        %850 = vmatprep.subr.bf16.mxu0 0
        %851 = vmatpush1.bf16.msra.mxu0 0
        %852 = vmatprep.subr.bf16.mxu0 0
        %853 = vmatpush1.bf16.msra.mxu0 %v836
        %854 = vmatprep.subr.bf16.mxu0 0
        %855 = vmatpush2.bf16.msra.mxu0 0
        %856 = vmatprep.subr.bf16.mxu0 0
        %857 = vmatpush2.bf16.msra.mxu0 0
        %858 = vmatprep.subr.bf16.mxu0 0
        %859 = vmatpush2.bf16.msra.mxu0 0
        %860 = vmatprep.subr.bf16.mxu0 0
        %861 = vmatpush2.bf16.msra.mxu0 0
        %862 = vmatprep.subr.bf16.mxu0 0
        %863 = vmatpush2.bf16.msra.mxu0 0
        %864 = vmatprep.subr.bf16.mxu0 0
        %865 = vmatpush2.bf16.msra.mxu0 0
        %866 = vmatprep.subr.bf16.mxu0 0
        %867 = vmatpush2.bf16.msra.mxu0 0
        %868 = vmatprep.subr.bf16.mxu0 0
        %869 = vmatpush2.bf16.msra.mxu0 0
        %870 = vmatprep.mubr.bf16.mxu0 0
        %871 = vmatmul.mubr.bf16.gmra.mxu0 %v833
        %v872 = vpop.f32.mrf.mxu0
        %v873 = vadd.f32 0.0, %v872
        %v874 = vpop.f32.mrf.mxu0
        %v875 = vpop.f32.mrf.mxu0
        %v876 = vpop.f32.mrf.mxu0
        %877 = vdwg.mxu0
        %v879 = vsel %vm686, %v734, 0
        %v882 = vsel %vm742, %v738, 0
        %884 = vmatprep.subr.bf16.mxu0 0
        %885 = vmatpush1.bf16.msra.mxu0 0
        %886 = vmatprep.subr.bf16.mxu0 0
        %887 = vmatpush1.bf16.msra.mxu0 0
        %888 = vmatprep.subr.bf16.mxu0 0
        %889 = vmatpush1.bf16.msra.mxu0 0
        %890 = vmatprep.subr.bf16.mxu0 0
        %891 = vmatpush1.bf16.msra.mxu0 0
        %892 = vmatprep.subr.bf16.mxu0 0
        %893 = vmatpush1.bf16.msra.mxu0 0
        %894 = vmatprep.subr.bf16.mxu0 0
        %895 = vmatpush1.bf16.msra.mxu0 0
        %896 = vmatprep.subr.bf16.mxu0 0
        %897 = vmatpush1.bf16.msra.mxu0 0
        %898 = vmatprep.subr.bf16.mxu0 0
        %899 = vmatpush1.bf16.msra.mxu0 %v882
        %900 = vmatprep.subr.bf16.mxu0 0
        %901 = vmatpush2.bf16.msra.mxu0 0
        %902 = vmatprep.subr.bf16.mxu0 0
        %903 = vmatpush2.bf16.msra.mxu0 0
        %904 = vmatprep.subr.bf16.mxu0 0
        %905 = vmatpush2.bf16.msra.mxu0 0
        %906 = vmatprep.subr.bf16.mxu0 0
        %907 = vmatpush2.bf16.msra.mxu0 0
        %908 = vmatprep.subr.bf16.mxu0 0
        %909 = vmatpush2.bf16.msra.mxu0 0
        %910 = vmatprep.subr.bf16.mxu0 0
        %911 = vmatpush2.bf16.msra.mxu0 0
        %912 = vmatprep.subr.bf16.mxu0 0
        %913 = vmatpush2.bf16.msra.mxu0 0
        %914 = vmatprep.subr.bf16.mxu0 0
        %915 = vmatpush2.bf16.msra.mxu0 0
        %916 = vmatprep.mubr.bf16.mxu0 0
        %917 = vmatmul.mubr.bf16.gmra.mxu0 %v879
        %v918 = vpop.f32.mrf.mxu0
        %v919 = vadd.f32 0.0, %v918
        %v920 = vpop.f32.mrf.mxu0
        %v921 = vpop.f32.mrf.mxu0
        %v922 = vpop.f32.mrf.mxu0
        %923 = vdwg.mxu0
        %925 = vrot.lane.b32.xlu0 %v827, 16
        %v926 = vpop.permute.xlu0 %925
        %929 = vrot.lane.b32.xlu0 %v873, 32
        %v930 = vpop.permute.xlu0 %929
        %933 = vrot.lane.b32.xlu0 %v919, 48
        %v934 = vpop.permute.xlu0 %933
        %v936 = vsel %vm381, %v781, %v926
        %v937 = vsel %vm249, %v936, %v930
        %vm938 = vcmask 392192
        %v939 = vsel %vm938, %v937, %v934
        %v940 = vpack.c.bf16 %v939, %v939
        %v941 = vld [vmem:[%s3] sm:$0xf]
        %v942 = vld [vmem:[%s3 + $0x4] sm:$0xf]
        %v943 = vld [vmem:[%s3 + $0x8] sm:$0xf]
        %v944 = vld [vmem:[%s3 + $0xc] sm:$0xf]
        %v945 = vld [vmem:[%s3 + $0x10] sm:$0xf]
        %v946 = vld [vmem:[%s3 + $0x14] sm:$0xf]
        %v947 = vld [vmem:[%s3 + $0x18] sm:$0xf]
        %v948 = vld [vmem:[%s3 + $0x1c] sm:$0xf]
        %v957 = vunpack.c.l.b16 %v941
        %v958 = vunpack.c.l.b16 %v942
        %v959 = vunpack.c.l.b16 %v943
        %v960 = vunpack.c.l.b16 %v944
        %v961 = vunpack.c.l.b16 %v945
        %v962 = vunpack.c.l.b16 %v946
        %v963 = vunpack.c.l.b16 %v947
        %v964 = vunpack.c.l.b16 %v948
        %v965 = vpack.c.b16 %v958, %v957
        %v966 = vpack.c.b16 %v960, %v959
        %v967 = vpack.c.b16 %v962, %v961
        %v968 = vpack.c.b16 %v964, %v963
        %vm973 = vcmask 523264
        %v975 = vsel %vm973, %v940, 0
        %977 = vmatprep.subr.bf16.mxu0 0
        %978 = vmatpush1.bf16.msra.mxu0 0
        %979 = vmatprep.subr.bf16.mxu0 0
        %980 = vmatpush1.bf16.msra.mxu0 0
        %981 = vmatprep.subr.bf16.mxu0 0
        %982 = vmatpush1.bf16.msra.mxu0 0
        %983 = vmatprep.subr.bf16.mxu0 0
        %984 = vmatpush1.bf16.msra.mxu0 0
        %985 = vmatprep.subr.bf16.mxu0 0
        %986 = vmatpush1.bf16.msra.mxu0 %v968
        %987 = vmatprep.subr.bf16.mxu0 0
        %988 = vmatpush1.bf16.msra.mxu0 %v967
        %989 = vmatprep.subr.bf16.mxu0 0
        %990 = vmatpush1.bf16.msra.mxu0 %v966
        %991 = vmatprep.subr.bf16.mxu0 0
        %992 = vmatpush1.bf16.msra.mxu0 %v965
        %993 = vmatprep.subr.bf16.mxu0 0
        %994 = vmatpush2.bf16.msra.mxu0 0
        %995 = vmatprep.subr.bf16.mxu0 0
        %996 = vmatpush2.bf16.msra.mxu0 0
        %997 = vmatprep.subr.bf16.mxu0 0
        %998 = vmatpush2.bf16.msra.mxu0 0
        %999 = vmatprep.subr.bf16.mxu0 0
        %1000 = vmatpush2.bf16.msra.mxu0 0
        %1001 = vmatprep.subr.bf16.mxu0 0
        %1002 = vmatpush2.bf16.msra.mxu0 0
        %1003 = vmatprep.subr.bf16.mxu0 0
        %1004 = vmatpush2.bf16.msra.mxu0 0
        %1005 = vmatprep.subr.bf16.mxu0 0
        %1006 = vmatpush2.bf16.msra.mxu0 0
        %1007 = vmatprep.subr.bf16.mxu0 0
        %1008 = vmatpush2.bf16.msra.mxu0 0
        %1009 = vmatprep.mubr.bf16.mxu0 0
        %1010 = vmatmul.mubr.bf16.gmra.mxu0 %v975
        %v1011 = vpop.f32.mrf.mxu0
        %v1012 = vadd.f32 0.0, %v1011
        %v1013 = vpop.f32.mrf.mxu0
        %v1014 = vpop.f32.mrf.mxu0
        %v1015 = vpop.f32.mrf.mxu0
        %1016 = vdwg.mxu0
        %v1018 = vrot.slane %v1012, 1
        %1019 = vrot.lane.b32.xlu0 %v1018, 32
        %v1020 = vpop.permute.xlu0 %1019
        %v1022 = vrot.slane %v1012, 2
        %1023 = vrot.lane.b32.xlu0 %v1022, 64
        %v1024 = vpop.permute.xlu0 %1023
        %v1026 = vrot.slane %v1012, 3
        %1027 = vrot.lane.b32.xlu0 %v1026, 96
        %v1028 = vpop.permute.xlu0 %1027
        %v1030 = vrot.slane %v1012, 4
        %v1032 = vrot.slane %v1012, 5
        %1033 = vrot.lane.b32.xlu0 %v1032, 32
        %v1034 = vpop.permute.xlu0 %1033
        %v1036 = vrot.slane %v1012, 6
        %1037 = vrot.lane.b32.xlu0 %v1036, 64
        %v1038 = vpop.permute.xlu0 %1037
        %v1040 = vrot.slane %v1012, 7
        %1041 = vrot.lane.b32.xlu0 %v1040, 96
        %v1042 = vpop.permute.xlu0 %1041
        %v1044 = vsel %vm249, %v1012, %v1020
        %v1045 = vsel %vm973, %v1044, %v1024
        %vm1046 = vcmask 785408
        %v1047 = vsel %vm1046, %v1045, %v1028
        %v1048 = vsel %vm249, %v1030, %v1034
        %v1049 = vsel %vm973, %v1048, %v1038
        %v1050 = vsel %vm1046, %v1049, %v1042
        %v1053 = vcombine.low %v1047, %v1050
        %v1055 = vunpack.c.l.s4 1966171168
        %v1056 = vunpack.c.0.s8 %v1055
        %v1057 = vlaneseq
        %v1058 = vshrl.u32 %v1057, 7
        %v1059 = vsub.s32 %v1056, %v1058
        %v1060 = vrot.slane %v1053, %v1059
        %v1062 = vunpack.c.l.s4 1966171168
        %v1063 = vunpack.c.0.s8 %v1062
        %v1064 = vlaneseq
        %v1065 = vshrl.u32 %v1064, 7
        %v1066 = vsub.s32 %v1063, %v1065
        %v1067 = vrot.slane %v1060, %v1066
        %v1069 = vlaneseq
        %vm1070 = vcmp.ge.s32.totalorder %v1069, 0
        %vm1071 = vcmp.lt.s32.totalorder %v1069, 256
        %vm1072 = vmand %vm1070, %vm1071
        %1073 = vst.msk [vmem:[%s242] sm:$0x3] %vm1072, %v1067
        %s1074 = sand.u32 %s159, 1
        %s1075 = scalar_lea.sflag [#allocation3], %s1074
        %s1076 = sand.u32 %s159, 1
        %s1077 = smul.addr %s1076, 2
        %s1078 = scalar_lea.vmem [#allocation2], %s1077
        // Predicated region
        $region45: #{tpu_custom_call.1} parent=43 // pred_check
          %p1079 = pneg %p169
        $region46: #{tpu_custom_call.1} parent=43 // pred_check_branch
          %1081 = sbr.rel (%p1079) target = $region48
        $region47: #{tpu_custom_call.1} parent=43 // pred_region
          %s1083 = ssub.s32 32, 32
          %1084 = vsyncadd %s1075, %s1083
          %s1085 = smul.addr %s20, 2
          %s1086 = smul.addr %s1085, 16
          %s1087 = scalar_lea.hbm %s6, %s1086
          %s1089 = sshll.u32 %s1078, 4
          %s1090 = int_to_ptr.vmem [resolvable:$true] %s1089
          %1092 = dma.vmem_to_hbm [thread:$0]  %s1090, 32, %s1087, %s1075
        $region48: #{tpu_custom_call.1} parent=43 // pred_fallthru
          _
      $region44: #{tpu_custom_call.1} parent=5 // pred_fallthru
        _
      %p1093 = scmp.le.s32.totalorder 2, %s15
      // Predicated region
      $region49: #{tpu_custom_call.1} parent=5 // pred_check
        %p1094 = pneg %p1093
      $region50: #{tpu_custom_call.1} parent=5 // pred_check_branch
        %1096 = sbr.rel (%p1094) target = $region52
      $region51: #{tpu_custom_call.1} parent=5 // pred_region
        %s1097 = ssub.s32 %s15, 2
        // Predicated region
        $region53: #{tpu_custom_call.1} parent=51 // pred_check
          %p1098 = pneg %p175
        $region54: #{tpu_custom_call.1} parent=51 // pred_check_branch
          %1100 = sbr.rel (%p1098) target = $region56
        $region55: #{tpu_custom_call.1} parent=51 // pred_region
          %s1101 = sand.u32 %s160, 1
          %s1102 = scalar_lea.sflag [#allocation3], %s1101
          %s1103 = sand.u32 %s160, 1
          %s1104 = smul.addr %s1103, 2
          %s1105 = scalar_lea.vmem [#allocation2], %s1104
          %1106 = dma.done %s1102, 32
        $region56: #{tpu_custom_call.1} parent=51 // pred_fallthru
          _
      $region52: #{tpu_custom_call.1} parent=5 // pred_fallthru
        _
    $region6: #{tpu_custom_call.1} parent=1 // loop_footer
      %s19 = sadd.s32 1, %s15
    $region7: #{tpu_custom_call.1} parent=1 // loop_footer_branch
      %14 = sbr.rel target = $region3
    $region8: #{tpu_custom_call.1} parent=1 // loop_exit
      _
    %1107 = vsyncpa [#allocation3], 1
    %s1108 = scalar_lea.sflag [#allocation3], 1
    %1109 = vsyncpa %s1108, 1

</llo_original>
